<compile_context>
chip_gen: v7x
topology: tpu7x:2x2x1
jax: 0.10.0
libtpu: 0.0.40
codegen_flags: <defaults>
</compile_context>

<pallas_src>
import math
import jax
import jax.numpy as jnp
from jax import lax
from jax.experimental import pallas as pl
from jax.experimental.pallas import tpu as pltpu


def _layer_norm_f32(x, gamma, beta, eps=1e-5):
    """LayerNorm over the last axis, f32 math. gamma/beta broadcast over leading dims."""
    mu = jnp.mean(x, axis=-1, keepdims=True)
    var = jnp.mean(jnp.square(x - mu), axis=-1, keepdims=True)
    return (x - mu) * lax.rsqrt(var + eps) * gamma + beta


# ----------------------------------------------------------------------------
# Pallas kernel: one fused EncoderBlock
# ----------------------------------------------------------------------------
def make_encoder_block_kernel(num_heads, head_size):
    scale = 1.0 / math.sqrt(head_size)

    def kernel(x_ref, wqkv_ref, wproj_ref, bproj_ref,
               w1_ref, b1_ref, w2_ref, b2_ref,
               lng_ref, lnb_ref, o_ref):
        bt, T, E = x_ref.shape
        HD = num_heads * head_size
        dt = x_ref.dtype                      # storage/MXU dtype (f32 or bf16)

        x_in = x_ref[...]                     # (Bt, T, E)
        xf_in = x_in.reshape(bt * T, E)       # flatten rows: matmul M = Bt*T

        # ---- fused QKV projection (one MXU pass, f32 accumulate) ----
        qkv = jnp.dot(xf_in, wqkv_ref[...],
                      preferred_element_type=jnp.float32)      # (Bt*T, 3*HD) f32

        # fold 1/sqrt(hs) into q (smaller than scaling the (T,T) scores)
        q_all = qkv[:, 0 * HD:1 * HD] * scale
        k_all = qkv[:, 1 * HD:2 * HD]
        v_all = qkv[:, 2 * HD:3 * HD]

        # ---- multi-head self-attention, NO mask (bidirectional encoder) ----
        head_outs = []
        for h in range(num_heads):            # static loop; 128-aligned lane slices
            sl = slice(h * head_size, (h + 1) * head_size)
            qh = q_all[:, sl].reshape(bt, T, head_size).astype(dt)
            kh = k_all[:, sl].reshape(bt, T, head_size).astype(dt)
            vh = v_all[:, sl].reshape(bt, T, head_size).astype(dt)

            s = jnp.einsum('btd,bsd->bts', qh, kh,
                           preferred_element_type=jnp.float32)  # (Bt, T, T) f32
            s = s - jnp.max(s, axis=-1, keepdims=True)
            p = jnp.exp(s)
            l = jnp.sum(p, axis=-1, keepdims=True)
            p = p * pl.reciprocal(l, approx=True)               # EUP, frees VALU
            head_outs.append(
                jnp.einsum('bts,bsd->btd', p.astype(dt), vh,
                           preferred_element_type=jnp.float32))
        attn = jnp.concatenate(head_outs, axis=-1)              # (Bt, T, HD)
        attn = attn.reshape(bt * T, HD).astype(dt)

        # ---- output projection + residual + LayerNorm ----
        proj = jnp.dot(attn, wproj_ref[...],
                       preferred_element_type=jnp.float32) \
               + bproj_ref[...].astype(jnp.float32)             # (Bt*T, E) f32
        g = lng_ref[...].astype(jnp.float32)
        b = lnb_ref[...].astype(jnp.float32)
        h1 = _layer_norm_f32(xf_in.astype(jnp.float32) + proj, g, b)

        # ---- FFN (Linear -> ReLU -> Linear) + residual + same LayerNorm ----
        hid = jnp.dot(h1.astype(dt), w1_ref[...],
                      preferred_element_type=jnp.float32) \
              + b1_ref[...].astype(jnp.float32)
        hid = jnp.maximum(hid, 0.0)
        ffn = jnp.dot(hid.astype(dt), w2_ref[...],
                      preferred_element_type=jnp.float32) \
              + b2_ref[...].astype(jnp.float32)
        h2 = _layer_norm_f32(h1 + ffn, g, b)                    # shared LN weights

        o_ref[...] = h2.reshape(bt, T, E).astype(o_ref.dtype)

    return kernel


# ----------------------------------------------------------------------------
# Wrapper
# ----------------------------------------------------------------------------
def encoder_block_forward(x, params, num_heads, head_size, *, batch_tile=None):
    """EncoderBlock.forward(x, mask=None). Dropout = identity (eval mode)."""
    # TODO(synk): optional padding-mask input (mask is not None path) is not
    # implemented as a kernel input; only the mask=None encoder path is covered.
    B, T, E = x.shape
    if batch_tile is None:
        batch_tile = 2 if (B % 2 == 0 and B >= 2) else 1
    assert B % batch_tile == 0

    weights = [params["wqkv"], params["wproj"], params["bproj"],
               params["w1"], params["b1"], params["w2"], params["b2"],
               params["ln_g"], params["ln_b"]]

    def full_spec(w):
        nd = w.ndim
        return pl.BlockSpec(w.shape, lambda i, _nd=nd: (0,) * _nd)

    return pl.pallas_call(
        make_encoder_block_kernel(num_heads, head_size),
        out_shape=jax.ShapeDtypeStruct((B, T, E), x.dtype),
        grid=(B // batch_tile,),
        in_specs=[pl.BlockSpec((batch_tile, T, E), lambda i: (i, 0, 0))]
                 + [full_spec(w) for w in weights],
        out_specs=pl.BlockSpec((batch_tile, T, E), lambda i: (i, 0, 0)),
        compiler_params=pltpu.CompilerParams(
            dimension_semantics=("parallel",),
            vmem_limit_bytes=64 * 1024 * 1024),
    )(x, *weights)


# ----------------------------------------------------------------------------
# Deterministic parameter init (weights stored transposed vs nn.Linear: (in, out))
# ----------------------------------------------------------------------------
def init_params(key, E, head_size, num_heads, n_hidden, dtype=jnp.float32):
    HD = num_heads * head_size
    ks = jax.random.split(key, 9)

    def nrm(k, shape, s=0.02):
        return (s * jax.random.normal(k, shape, jnp.float32)).astype(dtype)

    return {
        "wqkv": nrm(ks[0], (E, 3 * HD)),          # q|k|v concatenated on out dim
        "wproj": nrm(ks[1], (HD, E)),
        "bproj": nrm(ks[2], (1, E)),
        "w1": nrm(ks[3], (E, n_hidden)),
        "b1": nrm(ks[4], (1, n_hidden)),
        "w2": nrm(ks[5], (n_hidden, E)),
        "b2": nrm(ks[6], (1, E)),
        "ln_g": (1.0 + 0.1 * jax.random.normal(ks[7], (1, E), jnp.float32)).astype(dtype),
        "ln_b": (0.1 * jax.random.normal(ks[8], (1, E), jnp.float32)).astype(dtype),
    }


# ----------------------------------------------------------------------------
# Pure-JAX reference (mirrors the PyTorch EncoderBlock, eval mode, mask=None)
# ----------------------------------------------------------------------------
def ref_encoder_block(x, params, num_heads, head_size):
    pf = {k: v.astype(jnp.float32) for k, v in params.items()}
    x = x.astype(jnp.float32)
    HD = num_heads * head_size
    qkv = x @ pf["wqkv"]
    q, k, v = qkv[..., :HD], qkv[..., HD:2 * HD], qkv[..., 2 * HD:]
    outs = []
    for h in range(num_heads):
        sl = slice(h * head_size, (h + 1) * head_size)
        s = q[..., sl] @ jnp.swapaxes(k[..., sl], -1, -2) / math.sqrt(head_size)
        probs = jax.nn.softmax(s, axis=-1)          # no mask: bidirectional encoder
        outs.append(probs @ v[..., sl])
    attn = jnp.concatenate(outs, axis=-1)
    x = x + attn @ pf["wproj"] + pf["bproj"][0]
    x = _layer_norm_f32(x, pf["ln_g"], pf["ln_b"])
    hid = jax.nn.relu(x @ pf["w1"] + pf["b1"][0])
    x = x + hid @ pf["w2"] + pf["b2"][0]
    x = _layer_norm_f32(x, pf["ln_g"], pf["ln_b"])
    return x


# ----------------------------------------------------------------------------
if __name__ == "__main__":
    # Small but lane-dense config: E=128, head_size=128, 2 heads, n_hidden=128
    # (module default), block_size=16 (tril buffer unused: encoder, mask=None).
    E, HEAD, NHEADS, NHIDDEN = 128, 128, 2, 128
    B, T = 4, 16

    key = jax.random.PRNGKey(0)
    pkey, xkey = jax.random.split(key)
    params = init_params(pkey, E, HEAD, NHEADS, NHIDDEN, dtype=jnp.float32)
    x = jax.random.normal(xkey, (B, T, E), jnp.float32)

    out = jax.block_until_ready(
        encoder_block_forward(x, params, NHEADS, HEAD, batch_tile=2))
    ref = jax.block_until_ready(ref_encoder_block(x, params, NHEADS, HEAD))
    assert out.shape == (B, T, E)
    assert jnp.allclose(out, ref, atol=5e-3, rtol=5e-3), "mismatch vs reference"

    # bf16 storage path (recommended on v6e/v7x: MXU-native inputs, f32 accumulate)
    params_bf = jax.tree_util.tree_map(lambda a: a.astype(jnp.bfloat16), params)
    out_bf = jax.block_until_ready(
        encoder_block_forward(x.astype(jnp.bfloat16), params_bf, NHEADS, HEAD,
                              batch_tile=2))
    assert out_bf.shape == (B, T, E)
    assert bool(jnp.all(jnp.isfinite(out_bf.astype(jnp.float32))))

    # TODO(synk): flash-style query/KV tiling of the (T,T) score matrix would be
    # needed for long sequences (v7x 64 MiB VMEM); unnecessary at this block_size.
    print("KERNEL_OK")
</pallas_src>

<mosaic_0001>
module attributes {stable_mosaic.version = 11 : i64} {
  func.func @kernel(%arg0: i32, %arg1: memref<2x16x128xf32, #tpu.memory_space<vmem>>, %arg2: memref<128x768xf32, #tpu.memory_space<vmem>>, %arg3: memref<256x128xf32, #tpu.memory_space<vmem>>, %arg4: memref<1x128xf32, #tpu.memory_space<vmem>>, %arg5: memref<128x128xf32, #tpu.memory_space<vmem>>, %arg6: memref<1x128xf32, #tpu.memory_space<vmem>>, %arg7: memref<128x128xf32, #tpu.memory_space<vmem>>, %arg8: memref<1x128xf32, #tpu.memory_space<vmem>>, %arg9: memref<1x128xf32, #tpu.memory_space<vmem>>, %arg10: memref<1x128xf32, #tpu.memory_space<vmem>>, %arg11: memref<2x16x128xf32, #tpu.memory_space<vmem>>) attributes {dimension_semantics = [#tpu.dimension_semantics<parallel>], iteration_bounds = array<i64: 2>, scalar_prefetch = 0 : i64, scratch_operands = 0 : i64, tpu.core_type = #tpu.core_type<tc>, window_params = [{transform_indices = @transform_0, window_bounds = array<i64: 2, 16, 128>}, {pipeline_mode = #tpu.pipeline_mode<synchronous>, transform_indices = @transform_1, window_bounds = array<i64: 128, 768>}, {pipeline_mode = #tpu.pipeline_mode<synchronous>, transform_indices = @transform_2, window_bounds = array<i64: 256, 128>}, {pipeline_mode = #tpu.pipeline_mode<synchronous>, transform_indices = @transform_3, window_bounds = array<i64: 1, 128>}, {pipeline_mode = #tpu.pipeline_mode<synchronous>, transform_indices = @transform_4, window_bounds = array<i64: 128, 128>}, {pipeline_mode = #tpu.pipeline_mode<synchronous>, transform_indices = @transform_5, window_bounds = array<i64: 1, 128>}, {pipeline_mode = #tpu.pipeline_mode<synchronous>, transform_indices = @transform_6, window_bounds = array<i64: 128, 128>}, {pipeline_mode = #tpu.pipeline_mode<synchronous>, transform_indices = @transform_7, window_bounds = array<i64: 1, 128>}, {pipeline_mode = #tpu.pipeline_mode<synchronous>, transform_indices = @transform_8, window_bounds = array<i64: 1, 128>}, {pipeline_mode = #tpu.pipeline_mode<synchronous>, transform_indices = @transform_9, window_bounds = array<i64: 1, 128>}, {transform_indices = @transform_10, window_bounds = array<i64: 2, 16, 128>}]} {
    %c0 = arith.constant 0 : index
    %c0_0 = arith.constant 0 : index
    %c0_1 = arith.constant 0 : index
    %0 = vector.load %arg1[%c0, %c0_0, %c0_1] : memref<2x16x128xf32, #tpu.memory_space<vmem>>, vector<2x16x128xf32>
    %1 = vector.shape_cast %0 : vector<2x16x128xf32> to vector<32x128xf32>
    %c0_2 = arith.constant 0 : index
    %c0_3 = arith.constant 0 : index
    %2 = vector.load %arg2[%c0_2, %c0_3] : memref<128x768xf32, #tpu.memory_space<vmem>>, vector<128x768xf32>
    %cst = arith.constant dense<0.000000e+00> : vector<32x768xf32>
    %3 = tpu.matmul %1, %2, %cst {dimension_numbers = #tpu.dot_dimension_numbers<[1], [0], [0], [1], [0, 0, 1, 1], [], []>} : vector<32x128xf32>, vector<128x768xf32>, vector<32x768xf32> -> vector<32x768xf32>
    %4 = vector.extract_strided_slice %3 {offsets = [0, 0], sizes = [32, 256], strides = [1, 1]} : vector<32x768xf32> to vector<32x256xf32>
    %cst_4 = arith.constant 0.0883883461 : f32
    %5 = vector.broadcast %cst_4 : f32 to vector<32x256xf32>
    %6 = arith.mulf %4, %5 : vector<32x256xf32>
    %7 = vector.extract_strided_slice %3 {offsets = [0, 256], sizes = [32, 256], strides = [1, 1]} : vector<32x768xf32> to vector<32x256xf32>
    %8 = vector.extract_strided_slice %3 {offsets = [0, 512], sizes = [32, 256], strides = [1, 1]} : vector<32x768xf32> to vector<32x256xf32>
    %9 = vector.extract_strided_slice %6 {offsets = [0, 0], sizes = [32, 128], strides = [1, 1]} : vector<32x256xf32> to vector<32x128xf32>
    %10 = vector.shape_cast %9 : vector<32x128xf32> to vector<2x16x128xf32>
    %11 = vector.extract_strided_slice %7 {offsets = [0, 0], sizes = [32, 128], strides = [1, 1]} : vector<32x256xf32> to vector<32x128xf32>
    %12 = vector.shape_cast %11 : vector<32x128xf32> to vector<2x16x128xf32>
    %13 = vector.extract_strided_slice %8 {offsets = [0, 0], sizes = [32, 128], strides = [1, 1]} : vector<32x256xf32> to vector<32x128xf32>
    %14 = vector.shape_cast %13 : vector<32x128xf32> to vector<2x16x128xf32>
    "tpu.trace_start"() <{level = 10 : i32, message = "btd,bsd->bts"}> : () -> ()
    %cst_5 = arith.constant dense<0.000000e+00> : vector<2x16x16xf32>
    %15 = tpu.matmul %10, %12, %cst_5 {dimension_numbers = #tpu.dot_dimension_numbers<[2], [2], [1], [1], [0, 0, 0, 1, 1, 1], [0], [0]>} : vector<2x16x128xf32>, vector<2x16x128xf32>, vector<2x16x16xf32> -> vector<2x16x16xf32>
    "tpu.trace_stop"() : () -> ()
    %cst_6 = arith.constant dense<0xFF800000> : vector<2x16xf32>
    %16 = vector.multi_reduction <maximumf>, %15, %cst_6 [2] : vector<2x16x16xf32> to vector<2x16xf32>
    %17 = vector.shape_cast %16 : vector<2x16xf32> to vector<2x16x1xf32>
    %18 = vector.broadcast %17 : vector<2x16x1xf32> to vector<2x16x16xf32>
    %19 = arith.subf %15, %18 : vector<2x16x16xf32>
    %20 = math.exp %19 : vector<2x16x16xf32>
    %cst_7 = arith.constant dense<0.000000e+00> : vector<2x16xf32>
    %21 = vector.multi_reduction <add>, %20, %cst_7 [2] : vector<2x16x16xf32> to vector<2x16xf32>
    %22 = vector.shape_cast %21 : vector<2x16xf32> to vector<2x16x1xf32>
    %23 = tpu.reciprocal %22 {approx = true} : vector<2x16x1xf32> -> vector<2x16x1xf32>
    %24 = vector.broadcast %23 : vector<2x16x1xf32> to vector<2x16x16xf32>
    %25 = arith.mulf %20, %24 : vector<2x16x16xf32>
    "tpu.trace_start"() <{level = 10 : i32, message = "bts,bsd->btd"}> : () -> ()
    %cst_8 = arith.constant dense<0.000000e+00> : vector<2x16x128xf32>
    %26 = tpu.matmul %25, %14, %cst_8 {dimension_numbers = #tpu.dot_dimension_numbers<[2], [1], [1], [2], [0, 0, 0, 1, 1, 2], [0], [0]>} : vector<2x16x16xf32>, vector<2x16x128xf32>, vector<2x16x128xf32> -> vector<2x16x128xf32>
    "tpu.trace_stop"() : () -> ()
    %27 = vector.extract_strided_slice %6 {offsets = [0, 128], sizes = [32, 128], strides = [1, 1]} : vector<32x256xf32> to vector<32x128xf32>
    %28 = vector.shape_cast %27 : vector<32x128xf32> to vector<2x16x128xf32>
    %29 = vector.extract_strided_slice %7 {offsets = [0, 128], sizes = [32, 128], strides = [1, 1]} : vector<32x256xf32> to vector<32x128xf32>
    %30 = vector.shape_cast %29 : vector<32x128xf32> to vector<2x16x128xf32>
    %31 = vector.extract_strided_slice %8 {offsets = [0, 128], sizes = [32, 128], strides = [1, 1]} : vector<32x256xf32> to vector<32x128xf32>
    %32 = vector.shape_cast %31 : vector<32x128xf32> to vector<2x16x128xf32>
    "tpu.trace_start"() <{level = 10 : i32, message = "btd,bsd->bts"}> : () -> ()
    %cst_9 = arith.constant dense<0.000000e+00> : vector<2x16x16xf32>
    %33 = tpu.matmul %28, %30, %cst_9 {dimension_numbers = #tpu.dot_dimension_numbers<[2], [2], [1], [1], [0, 0, 0, 1, 1, 1], [0], [0]>} : vector<2x16x128xf32>, vector<2x16x128xf32>, vector<2x16x16xf32> -> vector<2x16x16xf32>
    "tpu.trace_stop"() : () -> ()
    %cst_10 = arith.constant dense<0xFF800000> : vector<2x16xf32>
    %34 = vector.multi_reduction <maximumf>, %33, %cst_10 [2] : vector<2x16x16xf32> to vector<2x16xf32>
    %35 = vector.shape_cast %34 : vector<2x16xf32> to vector<2x16x1xf32>
    %36 = vector.broadcast %35 : vector<2x16x1xf32> to vector<2x16x16xf32>
    %37 = arith.subf %33, %36 : vector<2x16x16xf32>
    %38 = math.exp %37 : vector<2x16x16xf32>
    %cst_11 = arith.constant dense<0.000000e+00> : vector<2x16xf32>
    %39 = vector.multi_reduction <add>, %38, %cst_11 [2] : vector<2x16x16xf32> to vector<2x16xf32>
    %40 = vector.shape_cast %39 : vector<2x16xf32> to vector<2x16x1xf32>
    %41 = tpu.reciprocal %40 {approx = true} : vector<2x16x1xf32> -> vector<2x16x1xf32>
    %42 = vector.broadcast %41 : vector<2x16x1xf32> to vector<2x16x16xf32>
    %43 = arith.mulf %38, %42 : vector<2x16x16xf32>
    "tpu.trace_start"() <{level = 10 : i32, message = "bts,bsd->btd"}> : () -> ()
    %cst_12 = arith.constant dense<0.000000e+00> : vector<2x16x128xf32>
    %44 = tpu.matmul %43, %32, %cst_12 {dimension_numbers = #tpu.dot_dimension_numbers<[2], [1], [1], [2], [0, 0, 0, 1, 1, 2], [0], [0]>} : vector<2x16x16xf32>, vector<2x16x128xf32>, vector<2x16x128xf32> -> vector<2x16x128xf32>
    "tpu.trace_stop"() : () -> ()
    %45 = tpu.concatenate %26, %44 in 2 : vector<2x16x128xf32>, vector<2x16x128xf32> -> vector<2x16x256xf32>
    %46 = vector.shape_cast %45 : vector<2x16x256xf32> to vector<32x256xf32>
    %c0_13 = arith.constant 0 : index
    %c0_14 = arith.constant 0 : index
    %47 = vector.load %arg3[%c0_13, %c0_14] : memref<256x128xf32, #tpu.memory_space<vmem>>, vector<256x128xf32>
    %cst_15 = arith.constant dense<0.000000e+00> : vector<32x128xf32>
    %48 = tpu.matmul %46, %47, %cst_15 {dimension_numbers = #tpu.dot_dimension_numbers<[1], [0], [0], [1], [0, 0, 1, 1], [], []>} : vector<32x256xf32>, vector<256x128xf32>, vector<32x128xf32> -> vector<32x128xf32>
    %c0_16 = arith.constant 0 : index
    %c0_17 = arith.constant 0 : index
    %49 = vector.load %arg4[%c0_16, %c0_17] : memref<1x128xf32, #tpu.memory_space<vmem>>, vector<1x128xf32>
    %50 = vector.broadcast %49 : vector<1x128xf32> to vector<32x128xf32>
    %51 = arith.addf %48, %50 : vector<32x128xf32>
    %c0_18 = arith.constant 0 : index
    %c0_19 = arith.constant 0 : index
    %52 = vector.load %arg9[%c0_18, %c0_19] : memref<1x128xf32, #tpu.memory_space<vmem>>, vector<1x128xf32>
    %c0_20 = arith.constant 0 : index
    %c0_21 = arith.constant 0 : index
    %53 = vector.load %arg10[%c0_20, %c0_21] : memref<1x128xf32, #tpu.memory_space<vmem>>, vector<1x128xf32>
    %54 = arith.addf %1, %51 : vector<32x128xf32>
    %cst_22 = arith.constant dense<0.000000e+00> : vector<32xf32>
    %55 = vector.multi_reduction <add>, %54, %cst_22 [1] : vector<32x128xf32> to vector<32xf32>
    %56 = vector.shape_cast %55 : vector<32xf32> to vector<32x1xf32>
    %cst_23 = arith.constant 1.280000e+02 : f32
    %57 = vector.broadcast %cst_23 : f32 to vector<32x1xf32>
    %58 = arith.divf %56, %57 : vector<32x1xf32>
    %59 = vector.broadcast %58 : vector<32x1xf32> to vector<32x128xf32>
    %60 = arith.subf %54, %59 : vector<32x128xf32>
    %61 = arith.mulf %60, %60 : vector<32x128xf32>
    %cst_24 = arith.constant dense<0.000000e+00> : vector<32xf32>
    %62 = vector.multi_reduction <add>, %61, %cst_24 [1] : vector<32x128xf32> to vector<32xf32>
    %63 = vector.shape_cast %62 : vector<32xf32> to vector<32x1xf32>
    %cst_25 = arith.constant 1.280000e+02 : f32
    %64 = vector.broadcast %cst_25 : f32 to vector<32x1xf32>
    %65 = arith.divf %63, %64 : vector<32x1xf32>
    %66 = vector.broadcast %58 : vector<32x1xf32> to vector<32x128xf32>
    %67 = arith.subf %54, %66 : vector<32x128xf32>
    %cst_26 = arith.constant 9.99999974E-6 : f32
    %68 = vector.broadcast %cst_26 : f32 to vector<32x1xf32>
    %69 = arith.addf %65, %68 : vector<32x1xf32>
    %70 = math.rsqrt %69 : vector<32x1xf32>
    %71 = vector.broadcast %70 : vector<32x1xf32> to vector<32x128xf32>
    %72 = arith.mulf %67, %71 : vector<32x128xf32>
    %73 = vector.broadcast %52 : vector<1x128xf32> to vector<32x128xf32>
    %74 = arith.mulf %72, %73 : vector<32x128xf32>
    %75 = vector.broadcast %53 : vector<1x128xf32> to vector<32x128xf32>
    %76 = arith.addf %74, %75 : vector<32x128xf32>
    %c0_27 = arith.constant 0 : index
    %c0_28 = arith.constant 0 : index
    %77 = vector.load %arg5[%c0_27, %c0_28] : memref<128x128xf32, #tpu.memory_space<vmem>>, vector<128x128xf32>
    %cst_29 = arith.constant dense<0.000000e+00> : vector<32x128xf32>
    %78 = tpu.matmul %76, %77, %cst_29 {dimension_numbers = #tpu.dot_dimension_numbers<[1], [0], [0], [1], [0, 0, 1, 1], [], []>} : vector<32x128xf32>, vector<128x128xf32>, vector<32x128xf32> -> vector<32x128xf32>
    %c0_30 = arith.constant 0 : index
    %c0_31 = arith.constant 0 : index
    %79 = vector.load %arg6[%c0_30, %c0_31] : memref<1x128xf32, #tpu.memory_space<vmem>>, vector<1x128xf32>
    %80 = vector.broadcast %79 : vector<1x128xf32> to vector<32x128xf32>
    %81 = arith.addf %78, %80 : vector<32x128xf32>
    %cst_32 = arith.constant 0.000000e+00 : f32
    %82 = vector.broadcast %cst_32 : f32 to vector<32x128xf32>
    %83 = arith.maximumf %81, %82 : vector<32x128xf32>
    %c0_33 = arith.constant 0 : index
    %c0_34 = arith.constant 0 : index
    %84 = vector.load %arg7[%c0_33, %c0_34] : memref<128x128xf32, #tpu.memory_space<vmem>>, vector<128x128xf32>
    %cst_35 = arith.constant dense<0.000000e+00> : vector<32x128xf32>
    %85 = tpu.matmul %83, %84, %cst_35 {dimension_numbers = #tpu.dot_dimension_numbers<[1], [0], [0], [1], [0, 0, 1, 1], [], []>} : vector<32x128xf32>, vector<128x128xf32>, vector<32x128xf32> -> vector<32x128xf32>
    %c0_36 = arith.constant 0 : index
    %c0_37 = arith.constant 0 : index
    %86 = vector.load %arg8[%c0_36, %c0_37] : memref<1x128xf32, #tpu.memory_space<vmem>>, vector<1x128xf32>
    %87 = vector.broadcast %86 : vector<1x128xf32> to vector<32x128xf32>
    %88 = arith.addf %85, %87 : vector<32x128xf32>
    %89 = arith.addf %76, %88 : vector<32x128xf32>
    %cst_38 = arith.constant dense<0.000000e+00> : vector<32xf32>
    %90 = vector.multi_reduction <add>, %89, %cst_38 [1] : vector<32x128xf32> to vector<32xf32>
    %91 = vector.shape_cast %90 : vector<32xf32> to vector<32x1xf32>
    %cst_39 = arith.constant 1.280000e+02 : f32
    %92 = vector.broadcast %cst_39 : f32 to vector<32x1xf32>
    %93 = arith.divf %91, %92 : vector<32x1xf32>
    %94 = vector.broadcast %93 : vector<32x1xf32> to vector<32x128xf32>
    %95 = arith.subf %89, %94 : vector<32x128xf32>
    %96 = arith.mulf %95, %95 : vector<32x128xf32>
    %cst_40 = arith.constant dense<0.000000e+00> : vector<32xf32>
    %97 = vector.multi_reduction <add>, %96, %cst_40 [1] : vector<32x128xf32> to vector<32xf32>
    %98 = vector.shape_cast %97 : vector<32xf32> to vector<32x1xf32>
    %cst_41 = arith.constant 1.280000e+02 : f32
    %99 = vector.broadcast %cst_41 : f32 to vector<32x1xf32>
    %100 = arith.divf %98, %99 : vector<32x1xf32>
    %101 = vector.broadcast %93 : vector<32x1xf32> to vector<32x128xf32>
    %102 = arith.subf %89, %101 : vector<32x128xf32>
    %cst_42 = arith.constant 9.99999974E-6 : f32
    %103 = vector.broadcast %cst_42 : f32 to vector<32x1xf32>
    %104 = arith.addf %100, %103 : vector<32x1xf32>
    %105 = math.rsqrt %104 : vector<32x1xf32>
    %106 = vector.broadcast %105 : vector<32x1xf32> to vector<32x128xf32>
    %107 = arith.mulf %102, %106 : vector<32x128xf32>
    %108 = vector.broadcast %52 : vector<1x128xf32> to vector<32x128xf32>
    %109 = arith.mulf %107, %108 : vector<32x128xf32>
    %110 = vector.broadcast %53 : vector<1x128xf32> to vector<32x128xf32>
    %111 = arith.addf %109, %110 : vector<32x128xf32>
    %112 = vector.shape_cast %111 : vector<32x128xf32> to vector<2x16x128xf32>
    %c0_43 = arith.constant 0 : index
    %c0_44 = arith.constant 0 : index
    %c0_45 = arith.constant 0 : index
    %113 = vector.load %arg11[%c0_43, %c0_44, %c0_45] : memref<2x16x128xf32, #tpu.memory_space<vmem>>, vector<2x16x128xf32>
    tpu.vector_store %arg11[%c0_43, %c0_44, %c0_45], %112 {strides = array<i32>} : memref<2x16x128xf32, #tpu.memory_space<vmem>>, vector<2x16x128xf32>,
    return
  }
  func.func @transform_0(%arg0: i32) -> (i32, i32, i32) {
    %c0_i32 = arith.constant 0 : i32
    %c0_i32_0 = arith.constant 0 : i32
    %c0_i32_1 = arith.constant 0 : i32
    return %arg0, %c0_i32, %c0_i32_0 : i32, i32, i32
  }
  func.func @transform_1(%arg0: i32) -> (i32, i32) {
    %c0_i32 = arith.constant 0 : i32
    %c0_i32_0 = arith.constant 0 : i32
    %c0_i32_1 = arith.constant 0 : i32
    return %c0_i32, %c0_i32_0 : i32, i32
  }
  func.func @transform_2(%arg0: i32) -> (i32, i32) {
    %c0_i32 = arith.constant 0 : i32
    %c0_i32_0 = arith.constant 0 : i32
    %c0_i32_1 = arith.constant 0 : i32
    return %c0_i32, %c0_i32_0 : i32, i32
  }
  func.func @transform_3(%arg0: i32) -> (i32, i32) {
    %c0_i32 = arith.constant 0 : i32
    %c0_i32_0 = arith.constant 0 : i32
    %c0_i32_1 = arith.constant 0 : i32
    return %c0_i32, %c0_i32_0 : i32, i32
  }
  func.func @transform_4(%arg0: i32) -> (i32, i32) {
    %c0_i32 = arith.constant 0 : i32
    %c0_i32_0 = arith.constant 0 : i32
    %c0_i32_1 = arith.constant 0 : i32
    return %c0_i32, %c0_i32_0 : i32, i32
  }
  func.func @transform_5(%arg0: i32) -> (i32, i32) {
    %c0_i32 = arith.constant 0 : i32
    %c0_i32_0 = arith.constant 0 : i32
    %c0_i32_1 = arith.constant 0 : i32
    return %c0_i32, %c0_i32_0 : i32, i32
  }
  func.func @transform_6(%arg0: i32) -> (i32, i32) {
    %c0_i32 = arith.constant 0 : i32
    %c0_i32_0 = arith.constant 0 : i32
    %c0_i32_1 = arith.constant 0 : i32
    return %c0_i32, %c0_i32_0 : i32, i32
  }
  func.func @transform_7(%arg0: i32) -> (i32, i32) {
    %c0_i32 = arith.constant 0 : i32
    %c0_i32_0 = arith.constant 0 : i32
    %c0_i32_1 = arith.constant 0 : i32
    return %c0_i32, %c0_i32_0 : i32, i32
  }
  func.func @transform_8(%arg0: i32) -> (i32, i32) {
    %c0_i32 = arith.constant 0 : i32
    %c0_i32_0 = arith.constant 0 : i32
    %c0_i32_1 = arith.constant 0 : i32
    return %c0_i32, %c0_i32_0 : i32, i32
  }
  func.func @transform_9(%arg0: i32) -> (i32, i32) {
    %c0_i32 = arith.constant 0 : i32
    %c0_i32_0 = arith.constant 0 : i32
    %c0_i32_1 = arith.constant 0 : i32
    return %c0_i32, %c0_i32_0 : i32, i32
  }
  func.func @transform_10(%arg0: i32) -> (i32, i32, i32) {
    %c0_i32 = arith.constant 0 : i32
    %c0_i32_0 = arith.constant 0 : i32
    %c0_i32_1 = arith.constant 0 : i32
    return %arg0, %c0_i32, %c0_i32_0 : i32, i32, i32
  }
}

</mosaic_0001>

<llo_original>
// kernel: tpu_custom_call.1
$region0: #{tpu_custom_call.1}
  #allocation0 [shape = 'u32[]', space=smem, size = 0x4, offset = 0x4, fixed_abs, tag = 'smem constant byte address 0x4 - core index']
  #allocation1 [shape = 'u32[144,128]{1,0:T(1,128)}', space=vmem, size = 0x12000, scoped, tag = 'internal scratch']
  %s0 = inlined_call_operand.hbm [shape: f32[4,16,128], index: 0, kind: input, shape index: {}]
  %s1 = inlined_call_operand.hbm [shape: f32[128,768], index: 1, kind: input, shape index: {}]
  %s2 = inlined_call_operand.hbm [shape: f32[256,128], index: 2, kind: input, shape index: {}]
  %s3 = inlined_call_operand.hbm [shape: f32[1,128], index: 3, kind: input, shape index: {}]
  %s4 = inlined_call_operand.hbm [shape: f32[128,128], index: 4, kind: input, shape index: {}]
  %s5 = inlined_call_operand.hbm [shape: f32[1,128], index: 5, kind: input, shape index: {}]
  %s6 = inlined_call_operand.hbm [shape: f32[128,128], index: 6, kind: input, shape index: {}]
  %s7 = inlined_call_operand.hbm [shape: f32[1,128], index: 7, kind: input, shape index: {}]
  %s8 = inlined_call_operand.hbm [shape: f32[1,128], index: 8, kind: input, shape index: {}]
  %s9 = inlined_call_operand.hbm [shape: f32[1,128], index: 9, kind: input, shape index: {}]
  %s10 = inlined_call_operand.hbm [shape: f32[4,16,128], index: 10, kind: output, shape index: {}]
  %s11 = sld [smem:[#allocation0]]
  $region113: #{tpu_custom_call.1} parent=0
    _
  %s13 = ssub.s32 1, %s11
  %s14 = scalar_select 0, %s13, %s11
  $region1: #{tpu_custom_call.1} parent=0
    #allocation2 [shape = 'u8[32768]{0}', space=vmem, size = 0x8000, scoped, tag = 'input window, operand 0']
    #allocation3 [shape = 's32[2]{0}', space=sflag, size = 0x8, scoped, tag = 'scoped memory for tpu_custom_call.1']
    #allocation4 [shape = 's32[2]{0}', space=sflag, size = 0x8, scoped, tag = 'scoped memory for tpu_custom_call.1']
    #allocation5 [shape = 'u8[393216]{0}', space=vmem, size = 0x60000, scoped, tag = 'input window, operand 1, single buffered']
    #allocation6 [shape = 's32[1]{0}', space=sflag, size = 0x4, scoped, tag = 'scoped memory for tpu_custom_call.1']
    #allocation7 [shape = 'u8[131072]{0}', space=vmem, size = 0x20000, scoped, tag = 'input window, operand 2, single buffered']
    #allocation8 [shape = 'u8[512]{0}', space=vmem, size = 0x400, scoped, tag = 'input window, operand 3, single buffered']
    #allocation9 [shape = 's32[1]{0}', space=sflag, size = 0x4, scoped, tag = 'scoped memory for tpu_custom_call.1']
    #allocation10 [shape = 'u8[65536]{0}', space=vmem, size = 0x10000, scoped, tag = 'input window, operand 4, single buffered']
    #allocation11 [shape = 'u8[512]{0}', space=vmem, size = 0x400, scoped, tag = 'input window, operand 5, single buffered']
    #allocation12 [shape = 's32[1]{0}', space=sflag, size = 0x4, scoped, tag = 'scoped memory for tpu_custom_call.1']
    #allocation13 [shape = 'u8[65536]{0}', space=vmem, size = 0x10000, scoped, tag = 'input window, operand 6, single buffered']
    #allocation14 [shape = 'u8[512]{0}', space=vmem, size = 0x400, scoped, tag = 'input window, operand 7, single buffered']
    #allocation15 [shape = 's32[1]{0}', space=sflag, size = 0x4, scoped, tag = 'scoped memory for tpu_custom_call.1']
    #allocation16 [shape = 'u8[512]{0}', space=vmem, size = 0x400, scoped, tag = 'input window, operand 8, single buffered']
    #allocation17 [shape = 'u8[512]{0}', space=vmem, size = 0x400, scoped, tag = 'input window, operand 9, single buffered']
    #allocation18 [shape = 's32[1]{0}', space=sflag, size = 0x4, scoped, tag = 'scoped memory for tpu_custom_call.1']
    #allocation19 [shape = 'u8[32768]{0}', space=vmem, size = 0x8000, scoped, tag = 'output window, operand 0']
    %15 = vsyncpa [#allocation3], 0
    %s16 = scalar_lea.sflag [#allocation3], 1
    %17 = vsyncpa %s16, 0
    %18 = vsyncpa [#allocation6], 0
    %19 = vsyncpa [#allocation9], 0
    %20 = vsyncpa [#allocation12], 0
    %21 = vsyncpa [#allocation15], 0
    %22 = vsyncpa [#allocation18], 0
    %23 = vsyncpa [#allocation4], 0
    %s24 = scalar_lea.sflag [#allocation4], 1
    %25 = vsyncpa %s24, 0
    loop: start=0, step=1, limit=4
    $region2: #{tpu_custom_call.1} parent=1 // loop_pre_header
      _
    $region3: #{tpu_custom_call.1} parent=1 // loop_header
      %s27 = sphi 0, %s31
      %p28 = scmp.ge.s32.totalorder %s27, 4
      %s37 = sphi 0, %s39
      %s40 = sphi 0, %s37
      %s41 = sphi 0, %s40
      %s57 = sphi 0, %s41
      %s61 = sphi 0, %s61
      %s63 = sphi 0, %s61
      %s64 = sphi 0, %s63
      %s78 = sphi 0, %s64
      %s82 = sphi 0, %s82
      %s84 = sphi 0, %s82
      %s85 = sphi 0, %s84
      %s99 = sphi 0, %s85
      %s103 = sphi 0, %s103
      %s105 = sphi 0, %s103
      %s106 = sphi 0, %s105
      %s120 = sphi 0, %s106
      %s124 = sphi 0, %s124
      %s126 = sphi 0, %s124
      %s127 = sphi 0, %s126
      %s141 = sphi 0, %s127
      %s145 = sphi 0, %s145
      %s147 = sphi 0, %s145
      %s148 = sphi 0, %s147
      %s162 = sphi 0, %s148
      %s166 = sphi 0, %s166
      %s168 = sphi 0, %s166
      %s169 = sphi 0, %s168
      %s183 = sphi 0, %s169
      %s187 = sphi 0, %s187
      %s189 = sphi 0, %s187
      %s190 = sphi 0, %s189
      %s204 = sphi 0, %s190
      %s208 = sphi 0, %s208
      %s210 = sphi 0, %s208
      %s211 = sphi 0, %s210
      %s225 = sphi 0, %s211
      %s229 = sphi 0, %s229
      %s231 = sphi 0, %s229
      %s232 = sphi 0, %s231
      %s246 = sphi 0, %s232
      %s252 = sphi 0, %s254
      %s255 = sphi 0, %s252
      %s256 = sphi 0, %s255
      %s272 = sphi 0, %s256
    $region4: #{tpu_custom_call.1} parent=1 // loop_header_branch
      %30 = sbr.rel (%p28) target = $region8
    $region5: #{tpu_custom_call.1} parent=1 // loop_body
      %s32 = ssub.s32 %s27, 1
      %s33 = ssub.s32 %s27, 2
      %s34 = sadd.s32 %s27, 1
      %s35 = ssub.s32 %s27, %s34
      %p36 = scmp.eq.s32.totalorder %s35, 0
      %s38 = sadd.s32 %s37, 1
      %s39 = scalar_select %p36, %s37, %s38
      %p42 = pneg %p36
      %p43 = scmp.eq.s32.totalorder %s27, 1
      %p44 = por %p42, %p43
      %p45 = scmp.ne.s32.totalorder %s37, %s40
      %p46 = scmp.eq.s32.totalorder %s27, 0
      %p47 = por %p45, %p46
      %p48 = scmp.ne.s32.totalorder %s37, %s40
      %p49 = scmp.eq.s32.totalorder %s32, 1
      %p50 = por %p48, %p49
      %p51 = scmp.ne.s32.totalorder %s40, %s41
      %p52 = scmp.eq.s32.totalorder %s32, 0
      %p53 = por %p51, %p52
      %p54 = scmp.ne.s32.totalorder %s40, %s41
      %p55 = scmp.eq.s32.totalorder %s33, 1
      %p56 = por %p54, %p55
      %p58 = scmp.ne.s32.totalorder %s41, %s57
      %p59 = scmp.eq.s32.totalorder %s33, 0
      %p60 = por %p58, %p59
      %s62 = sadd.s32 %s61, 1
      %p65 = scmp.eq.s32.totalorder %s27, 1
      %p66 = scmp.ne.s32.totalorder %s61, %s63
      %p67 = scmp.eq.s32.totalorder %s27, 0
      %p68 = por %p66, %p67
      %p69 = scmp.ne.s32.totalorder %s61, %s63
      %p70 = scmp.eq.s32.totalorder %s32, 1
      %p71 = por %p69, %p70
      %p72 = scmp.ne.s32.totalorder %s63, %s64
      %p73 = scmp.eq.s32.totalorder %s32, 0
      %p74 = por %p72, %p73
      %p75 = scmp.ne.s32.totalorder %s63, %s64
      %p76 = scmp.eq.s32.totalorder %s33, 1
      %p77 = por %p75, %p76
      %p79 = scmp.ne.s32.totalorder %s64, %s78
      %p80 = scmp.eq.s32.totalorder %s33, 0
      %p81 = por %p79, %p80
      %s83 = sadd.s32 %s82, 1
      %p86 = scmp.eq.s32.totalorder %s27, 1
      %p87 = scmp.ne.s32.totalorder %s82, %s84
      %p88 = scmp.eq.s32.totalorder %s27, 0
      %p89 = por %p87, %p88
      %p90 = scmp.ne.s32.totalorder %s82, %s84
      %p91 = scmp.eq.s32.totalorder %s32, 1
      %p92 = por %p90, %p91
      %p93 = scmp.ne.s32.totalorder %s84, %s85
      %p94 = scmp.eq.s32.totalorder %s32, 0
      %p95 = por %p93, %p94
      %p96 = scmp.ne.s32.totalorder %s84, %s85
      %p97 = scmp.eq.s32.totalorder %s33, 1
      %p98 = por %p96, %p97
      %p100 = scmp.ne.s32.totalorder %s85, %s99
      %p101 = scmp.eq.s32.totalorder %s33, 0
      %p102 = por %p100, %p101
      %s104 = sadd.s32 %s103, 1
      %p107 = scmp.eq.s32.totalorder %s27, 1
      %p108 = scmp.ne.s32.totalorder %s103, %s105
      %p109 = scmp.eq.s32.totalorder %s27, 0
      %p110 = por %p108, %p109
      %p111 = scmp.ne.s32.totalorder %s103, %s105
      %p112 = scmp.eq.s32.totalorder %s32, 1
      %p113 = por %p111, %p112
      %p114 = scmp.ne.s32.totalorder %s105, %s106
      %p115 = scmp.eq.s32.totalorder %s32, 0
      %p116 = por %p114, %p115
      %p117 = scmp.ne.s32.totalorder %s105, %s106
      %p118 = scmp.eq.s32.totalorder %s33, 1
      %p119 = por %p117, %p118
      %p121 = scmp.ne.s32.totalorder %s106, %s120
      %p122 = scmp.eq.s32.totalorder %s33, 0
      %p123 = por %p121, %p122
      %s125 = sadd.s32 %s124, 1
      %p128 = scmp.eq.s32.totalorder %s27, 1
      %p129 = scmp.ne.s32.totalorder %s124, %s126
      %p130 = scmp.eq.s32.totalorder %s27, 0
      %p131 = por %p129, %p130
      %p132 = scmp.ne.s32.totalorder %s124, %s126
      %p133 = scmp.eq.s32.totalorder %s32, 1
      %p134 = por %p132, %p133
      %p135 = scmp.ne.s32.totalorder %s126, %s127
      %p136 = scmp.eq.s32.totalorder %s32, 0
      %p137 = por %p135, %p136
      %p138 = scmp.ne.s32.totalorder %s126, %s127
      %p139 = scmp.eq.s32.totalorder %s33, 1
      %p140 = por %p138, %p139
      %p142 = scmp.ne.s32.totalorder %s127, %s141
      %p143 = scmp.eq.s32.totalorder %s33, 0
      %p144 = por %p142, %p143
      %s146 = sadd.s32 %s145, 1
      %p149 = scmp.eq.s32.totalorder %s27, 1
      %p150 = scmp.ne.s32.totalorder %s145, %s147
      %p151 = scmp.eq.s32.totalorder %s27, 0
      %p152 = por %p150, %p151
      %p153 = scmp.ne.s32.totalorder %s145, %s147
      %p154 = scmp.eq.s32.totalorder %s32, 1
      %p155 = por %p153, %p154
      %p156 = scmp.ne.s32.totalorder %s147, %s148
      %p157 = scmp.eq.s32.totalorder %s32, 0
      %p158 = por %p156, %p157
      %p159 = scmp.ne.s32.totalorder %s147, %s148
      %p160 = scmp.eq.s32.totalorder %s33, 1
      %p161 = por %p159, %p160
      %p163 = scmp.ne.s32.totalorder %s148, %s162
      %p164 = scmp.eq.s32.totalorder %s33, 0
      %p165 = por %p163, %p164
      %s167 = sadd.s32 %s166, 1
      %p170 = scmp.eq.s32.totalorder %s27, 1
      %p171 = scmp.ne.s32.totalorder %s166, %s168
      %p172 = scmp.eq.s32.totalorder %s27, 0
      %p173 = por %p171, %p172
      %p174 = scmp.ne.s32.totalorder %s166, %s168
      %p175 = scmp.eq.s32.totalorder %s32, 1
      %p176 = por %p174, %p175
      %p177 = scmp.ne.s32.totalorder %s168, %s169
      %p178 = scmp.eq.s32.totalorder %s32, 0
      %p179 = por %p177, %p178
      %p180 = scmp.ne.s32.totalorder %s168, %s169
      %p181 = scmp.eq.s32.totalorder %s33, 1
      %p182 = por %p180, %p181
      %p184 = scmp.ne.s32.totalorder %s169, %s183
      %p185 = scmp.eq.s32.totalorder %s33, 0
      %p186 = por %p184, %p185
      %s188 = sadd.s32 %s187, 1
      %p191 = scmp.eq.s32.totalorder %s27, 1
      %p192 = scmp.ne.s32.totalorder %s187, %s189
      %p193 = scmp.eq.s32.totalorder %s27, 0
      %p194 = por %p192, %p193
      %p195 = scmp.ne.s32.totalorder %s187, %s189
      %p196 = scmp.eq.s32.totalorder %s32, 1
      %p197 = por %p195, %p196
      %p198 = scmp.ne.s32.totalorder %s189, %s190
      %p199 = scmp.eq.s32.totalorder %s32, 0
      %p200 = por %p198, %p199
      %p201 = scmp.ne.s32.totalorder %s189, %s190
      %p202 = scmp.eq.s32.totalorder %s33, 1
      %p203 = por %p201, %p202
      %p205 = scmp.ne.s32.totalorder %s190, %s204
      %p206 = scmp.eq.s32.totalorder %s33, 0
      %p207 = por %p205, %p206
      %s209 = sadd.s32 %s208, 1
      %p212 = scmp.eq.s32.totalorder %s27, 1
      %p213 = scmp.ne.s32.totalorder %s208, %s210
      %p214 = scmp.eq.s32.totalorder %s27, 0
      %p215 = por %p213, %p214
      %p216 = scmp.ne.s32.totalorder %s208, %s210
      %p217 = scmp.eq.s32.totalorder %s32, 1
      %p218 = por %p216, %p217
      %p219 = scmp.ne.s32.totalorder %s210, %s211
      %p220 = scmp.eq.s32.totalorder %s32, 0
      %p221 = por %p219, %p220
      %p222 = scmp.ne.s32.totalorder %s210, %s211
      %p223 = scmp.eq.s32.totalorder %s33, 1
      %p224 = por %p222, %p223
      %p226 = scmp.ne.s32.totalorder %s211, %s225
      %p227 = scmp.eq.s32.totalorder %s33, 0
      %p228 = por %p226, %p227
      %s230 = sadd.s32 %s229, 1
      %p233 = scmp.eq.s32.totalorder %s27, 1
      %p234 = scmp.ne.s32.totalorder %s229, %s231
      %p235 = scmp.eq.s32.totalorder %s27, 0
      %p236 = por %p234, %p235
      %p237 = scmp.ne.s32.totalorder %s229, %s231
      %p238 = scmp.eq.s32.totalorder %s32, 1
      %p239 = por %p237, %p238
      %p240 = scmp.ne.s32.totalorder %s231, %s232
      %p241 = scmp.eq.s32.totalorder %s32, 0
      %p242 = por %p240, %p241
      %p243 = scmp.ne.s32.totalorder %s231, %s232
      %p244 = scmp.eq.s32.totalorder %s33, 1
      %p245 = por %p243, %p244
      %p247 = scmp.ne.s32.totalorder %s232, %s246
      %p248 = scmp.eq.s32.totalorder %s33, 0
      %p249 = por %p247, %p248
      %s250 = ssub.s32 %s27, %s34
      %p251 = scmp.eq.s32.totalorder %s250, 0
      %s253 = sadd.s32 %s252, 1
      %s254 = scalar_select %p251, %s252, %s253
      %p257 = pneg %p251
      %p258 = scmp.eq.s32.totalorder %s27, 1
      %p259 = por %p257, %p258
      %p260 = scmp.ne.s32.totalorder %s252, %s255
      %p261 = scmp.eq.s32.totalorder %s27, 0
      %p262 = por %p260, %p261
      %p263 = scmp.ne.s32.totalorder %s252, %s255
      %p264 = scmp.eq.s32.totalorder %s32, 1
      %p265 = por %p263, %p264
      %p266 = scmp.ne.s32.totalorder %s255, %s256
      %p267 = scmp.eq.s32.totalorder %s32, 0
      %p268 = por %p266, %p267
      %p269 = scmp.ne.s32.totalorder %s255, %s256
      %p270 = scmp.eq.s32.totalorder %s33, 1
      %p271 = por %p269, %p270
      %p273 = scmp.ne.s32.totalorder %s256, %s272
      %p274 = scmp.eq.s32.totalorder %s33, 0
      %p275 = por %p273, %p274
      %p276 = scmp.le.s32.totalorder 1, %s27
      %p277 = scmp.lt.s32.totalorder %s27, 3
      %p278 = pnand %p276, %p277
      %p279 = pneg %p278
      // Predicated region
      $region9: #{tpu_custom_call.1} parent=5 // pred_check
        _
      $region10: #{tpu_custom_call.1} parent=5 // pred_check_branch
        %281 = sbr.rel (%p278) target = $region12
      $region11: #{tpu_custom_call.1} parent=5 // pred_region
        %s282 = ssub.s32 %s27, 1
        // Predicated region
        $region13: #{tpu_custom_call.1} parent=11 // pred_check
          %p283 = pneg %p74
        $region14: #{tpu_custom_call.1} parent=11 // pred_check_branch
          %285 = sbr.rel (%p283) target = $region16
        $region15: #{tpu_custom_call.1} parent=11 // pred_region
          %s287 = ssub.s32 12288, 12288
          %288 = vsyncadd [#allocation6], %s287
          %s289 = sshll.u32 [#allocation5], 4
          %s290 = int_to_ptr.vmem [resolvable:$true] %s289
          %295 = dma.hbm_to_vmem [thread:$0]  %s1, 12288, %s290, [#allocation6], 768, 768, 48
        $region16: #{tpu_custom_call.1} parent=11 // pred_fallthru
          _
        // Predicated region
        $region17: #{tpu_custom_call.1} parent=11 // pred_check
          %p296 = pneg %p95
        $region18: #{tpu_custom_call.1} parent=11 // pred_check_branch
          %298 = sbr.rel (%p296) target = $region20
        $region19: #{tpu_custom_call.1} parent=11 // pred_region
          %s300 = ssub.s32 4096, 4096
          %301 = vsyncadd [#allocation6], %s300
          %s302 = sshll.u32 [#allocation7], 4
          %s303 = int_to_ptr.vmem [resolvable:$true] %s302
          %308 = dma.hbm_to_vmem [thread:$0]  %s2, 4096, %s303, [#allocation6], 128, 128, 8
        $region20: #{tpu_custom_call.1} parent=11 // pred_fallthru
          _
        // Predicated region
        $region21: #{tpu_custom_call.1} parent=11 // pred_check
          %p309 = pneg %p116
        $region22: #{tpu_custom_call.1} parent=11 // pred_check_branch
          %311 = sbr.rel (%p309) target = $region24
        $region23: #{tpu_custom_call.1} parent=11 // pred_region
          %s313 = ssub.s32 16, 16
          %314 = vsyncadd [#allocation9], %s313
          %s316 = sshll.u32 [#allocation8], 4
          %s317 = int_to_ptr.vmem [resolvable:$true] %s316
          %319 = dma.hbm_to_vmem [thread:$0]  %s3, 16, %s317, [#allocation9]
        $region24: #{tpu_custom_call.1} parent=11 // pred_fallthru
          _
        // Predicated region
        $region25: #{tpu_custom_call.1} parent=11 // pred_check
          %p320 = pneg %p137
        $region26: #{tpu_custom_call.1} parent=11 // pred_check_branch
          %322 = sbr.rel (%p320) target = $region28
        $region27: #{tpu_custom_call.1} parent=11 // pred_region
          %s324 = ssub.s32 2048, 2048
          %325 = vsyncadd [#allocation9], %s324
          %s326 = sshll.u32 [#allocation10], 4
          %s327 = int_to_ptr.vmem [resolvable:$true] %s326
          %332 = dma.hbm_to_vmem [thread:$0]  %s4, 2048, %s327, [#allocation9], 128, 128, 8
        $region28: #{tpu_custom_call.1} parent=11 // pred_fallthru
          _
        // Predicated region
        $region29: #{tpu_custom_call.1} parent=11 // pred_check
          %p333 = pneg %p158
        $region30: #{tpu_custom_call.1} parent=11 // pred_check_branch
          %335 = sbr.rel (%p333) target = $region32
        $region31: #{tpu_custom_call.1} parent=11 // pred_region
          %s337 = ssub.s32 16, 16
          %338 = vsyncadd [#allocation12], %s337
          %s340 = sshll.u32 [#allocation11], 4
          %s341 = int_to_ptr.vmem [resolvable:$true] %s340
          %343 = dma.hbm_to_vmem [thread:$0]  %s5, 16, %s341, [#allocation12]
        $region32: #{tpu_custom_call.1} parent=11 // pred_fallthru
          _
        // Predicated region
        $region33: #{tpu_custom_call.1} parent=11 // pred_check
          %p344 = pneg %p179
        $region34: #{tpu_custom_call.1} parent=11 // pred_check_branch
          %346 = sbr.rel (%p344) target = $region36
        $region35: #{tpu_custom_call.1} parent=11 // pred_region
          %s348 = ssub.s32 2048, 2048
          %349 = vsyncadd [#allocation12], %s348
          %s350 = sshll.u32 [#allocation13], 4
          %s351 = int_to_ptr.vmem [resolvable:$true] %s350
          %356 = dma.hbm_to_vmem [thread:$0]  %s6, 2048, %s351, [#allocation12], 128, 128, 8
        $region36: #{tpu_custom_call.1} parent=11 // pred_fallthru
          _
        // Predicated region
        $region37: #{tpu_custom_call.1} parent=11 // pred_check
          %p357 = pneg %p200
        $region38: #{tpu_custom_call.1} parent=11 // pred_check_branch
          %359 = sbr.rel (%p357) target = $region40
        $region39: #{tpu_custom_call.1} parent=11 // pred_region
          %s361 = ssub.s32 16, 16
          %362 = vsyncadd [#allocation15], %s361
          %s364 = sshll.u32 [#allocation14], 4
          %s365 = int_to_ptr.vmem [resolvable:$true] %s364
          %367 = dma.hbm_to_vmem [thread:$0]  %s7, 16, %s365, [#allocation15]
        $region40: #{tpu_custom_call.1} parent=11 // pred_fallthru
          _
        // Predicated region
        $region41: #{tpu_custom_call.1} parent=11 // pred_check
          %p368 = pneg %p221
        $region42: #{tpu_custom_call.1} parent=11 // pred_check_branch
          %370 = sbr.rel (%p368) target = $region44
        $region43: #{tpu_custom_call.1} parent=11 // pred_region
          %s372 = ssub.s32 16, 16
          %373 = vsyncadd [#allocation15], %s372
          %s375 = sshll.u32 [#allocation16], 4
          %s376 = int_to_ptr.vmem [resolvable:$true] %s375
          %378 = dma.hbm_to_vmem [thread:$0]  %s8, 16, %s376, [#allocation15]
        $region44: #{tpu_custom_call.1} parent=11 // pred_fallthru
          _
        // Predicated region
        $region45: #{tpu_custom_call.1} parent=11 // pred_check
          %p379 = pneg %p242
        $region46: #{tpu_custom_call.1} parent=11 // pred_check_branch
          %381 = sbr.rel (%p379) target = $region48
        $region47: #{tpu_custom_call.1} parent=11 // pred_region
          %s383 = ssub.s32 16, 16
          %384 = vsyncadd [#allocation18], %s383
          %s386 = sshll.u32 [#allocation17], 4
          %s387 = int_to_ptr.vmem [resolvable:$true] %s386
          %389 = dma.hbm_to_vmem [thread:$0]  %s9, 16, %s387, [#allocation18]
        $region48: #{tpu_custom_call.1} parent=11 // pred_fallthru
          _
      $region12: #{tpu_custom_call.1} parent=5 // pred_fallthru
        _
      %p390 = scmp.lt.s32.totalorder %s27, 2
      // Predicated region
      $region49: #{tpu_custom_call.1} parent=5 // pred_check
        %p391 = pneg %p390
      $region50: #{tpu_custom_call.1} parent=5 // pred_check_branch
        %393 = sbr.rel (%p391) target = $region52
      $region51: #{tpu_custom_call.1} parent=5 // pred_region
        // Predicated region
        $region53: #{tpu_custom_call.1} parent=51 // pred_check
          %p394 = pneg %p47
        $region54: #{tpu_custom_call.1} parent=51 // pred_check_branch
          %396 = sbr.rel (%p394) target = $region56
        $region55: #{tpu_custom_call.1} parent=51 // pred_region
          %s397 = sand.u32 %s37, 1
          %s398 = scalar_lea.sflag [#allocation3], %s397
          %s399 = sand.u32 %s37, 1
          %s400 = smul.addr %s399, 32
          %s401 = scalar_lea.vmem [#allocation2], %s400
          %s402 = smul.u32 2, %s27
          %s404 = ssub.s32 512, 512
          %405 = vsyncadd %s398, %s404
          %s406 = smul.addr %s402, 2
          %s407 = smul.addr %s406, 128
          %s408 = scalar_lea.hbm %s0, %s407
          %s409 = sshll.u32 %s401, 4
          %s410 = int_to_ptr.vmem [resolvable:$true] %s409
          %415 = dma.hbm_to_vmem [thread:$0]  %s408, 512, %s410, %s398, 128, 128, 8
        $region56: #{tpu_custom_call.1} parent=51 // pred_fallthru
          _
      $region52: #{tpu_custom_call.1} parent=5 // pred_fallthru
        _
      %p416 = scmp.le.s32.totalorder 1, %s27
      %p417 = scmp.lt.s32.totalorder %s27, 3
      %p418 = pnand %p416, %p417
      %p419 = pneg %p418
      // Predicated region
      $region57: #{tpu_custom_call.1} parent=5 // pred_check
        _
      $region58: #{tpu_custom_call.1} parent=5 // pred_check_branch
        %421 = sbr.rel (%p418) target = $region60
      $region59: #{tpu_custom_call.1} parent=5 // pred_region
        %s422 = ssub.s32 %s27, 1
        %s423 = sand.u32 %s40, 1
        %s424 = scalar_lea.sflag [#allocation3], %s423
        %s425 = sand.u32 %s40, 1
        %s426 = smul.addr %s425, 32
        %s427 = scalar_lea.vmem [#allocation2], %s426
        // Predicated region
        $region61: #{tpu_custom_call.1} parent=59 // pred_check
          %p428 = pneg %p53
        $region62: #{tpu_custom_call.1} parent=59 // pred_check_branch
          %430 = sbr.rel (%p428) target = $region64
        $region63: #{tpu_custom_call.1} parent=59 // pred_region
          %431 = dma.done %s424, 512
        $region64: #{tpu_custom_call.1} parent=59 // pred_fallthru
          _
        // Predicated region
        $region65: #{tpu_custom_call.1} parent=59 // pred_check
          %p432 = pneg %p74
        $region66: #{tpu_custom_call.1} parent=59 // pred_check_branch
          %434 = sbr.rel (%p432) target = $region68
        $region67: #{tpu_custom_call.1} parent=59 // pred_region
          %435 = dma.done [#allocation6], 12288
        $region68: #{tpu_custom_call.1} parent=59 // pred_fallthru
          _
        // Predicated region
        $region69: #{tpu_custom_call.1} parent=59 // pred_check
          %p436 = pneg %p95
        $region70: #{tpu_custom_call.1} parent=59 // pred_check_branch
          %438 = sbr.rel (%p436) target = $region72
        $region71: #{tpu_custom_call.1} parent=59 // pred_region
          %439 = dma.done [#allocation6], 4096
        $region72: #{tpu_custom_call.1} parent=59 // pred_fallthru
          _
        // Predicated region
        $region73: #{tpu_custom_call.1} parent=59 // pred_check
          %p440 = pneg %p116
        $region74: #{tpu_custom_call.1} parent=59 // pred_check_branch
          %442 = sbr.rel (%p440) target = $region76
        $region75: #{tpu_custom_call.1} parent=59 // pred_region
          %443 = dma.done [#allocation9], 16
        $region76: #{tpu_custom_call.1} parent=59 // pred_fallthru
          _
        // Predicated region
        $region77: #{tpu_custom_call.1} parent=59 // pred_check
          %p444 = pneg %p137
        $region78: #{tpu_custom_call.1} parent=59 // pred_check_branch
          %446 = sbr.rel (%p444) target = $region80
        $region79: #{tpu_custom_call.1} parent=59 // pred_region
          %447 = dma.done [#allocation9], 2048
        $region80: #{tpu_custom_call.1} parent=59 // pred_fallthru
          _
        // Predicated region
        $region81: #{tpu_custom_call.1} parent=59 // pred_check
          %p448 = pneg %p158
        $region82: #{tpu_custom_call.1} parent=59 // pred_check_branch
          %450 = sbr.rel (%p448) target = $region84
        $region83: #{tpu_custom_call.1} parent=59 // pred_region
          %451 = dma.done [#allocation12], 16
        $region84: #{tpu_custom_call.1} parent=59 // pred_fallthru
          _
        // Predicated region
        $region85: #{tpu_custom_call.1} parent=59 // pred_check
          %p452 = pneg %p179
        $region86: #{tpu_custom_call.1} parent=59 // pred_check_branch
          %454 = sbr.rel (%p452) target = $region88
        $region87: #{tpu_custom_call.1} parent=59 // pred_region
          %455 = dma.done [#allocation12], 2048
        $region88: #{tpu_custom_call.1} parent=59 // pred_fallthru
          _
        // Predicated region
        $region89: #{tpu_custom_call.1} parent=59 // pred_check
          %p456 = pneg %p200
        $region90: #{tpu_custom_call.1} parent=59 // pred_check_branch
          %458 = sbr.rel (%p456) target = $region92
        $region91: #{tpu_custom_call.1} parent=59 // pred_region
          %459 = dma.done [#allocation15], 16
        $region92: #{tpu_custom_call.1} parent=59 // pred_fallthru
          _
        // Predicated region
        $region93: #{tpu_custom_call.1} parent=59 // pred_check
          %p460 = pneg %p221
        $region94: #{tpu_custom_call.1} parent=59 // pred_check_branch
          %462 = sbr.rel (%p460) target = $region96
        $region95: #{tpu_custom_call.1} parent=59 // pred_region
          %463 = dma.done [#allocation15], 16
        $region96: #{tpu_custom_call.1} parent=59 // pred_fallthru
          _
        // Predicated region
        $region97: #{tpu_custom_call.1} parent=59 // pred_check
          %p464 = pneg %p242
        $region98: #{tpu_custom_call.1} parent=59 // pred_check_branch
          %466 = sbr.rel (%p464) target = $region100
        $region99: #{tpu_custom_call.1} parent=59 // pred_region
          %467 = dma.done [#allocation18], 16
        $region100: #{tpu_custom_call.1} parent=59 // pred_fallthru
          _
        %s468 = sand.u32 %s40, 1
        %s469 = scalar_lea.sflag [#allocation3], %s468
        %s470 = sand.u32 %s40, 1
        %s471 = smul.addr %s470, 32
        %s472 = scalar_lea.vmem [#allocation2], %s471
        %p473 = pneg %p53
        %p474 = pneg %p50
        %p475 = pneg %p74
        %p476 = pneg %p71
        %p477 = pneg %p95
        %p478 = pneg %p92
        %p479 = pneg %p116
        %p480 = pneg %p113
        %p481 = pneg %p137
        %p482 = pneg %p134
        %p483 = pneg %p158
        %p484 = pneg %p155
        %p485 = pneg %p179
        %p486 = pneg %p176
        %p487 = pneg %p200
        %p488 = pneg %p197
        %p489 = pneg %p221
        %p490 = pneg %p218
        %p491 = pneg %p242
        %p492 = pneg %p239
        %p493 = pneg %p268
        %p494 = pneg %p265
        %s495 = sand.u32 %s255, 1
        %s496 = scalar_lea.sflag [#allocation4], %s495
        %s497 = sand.u32 %s255, 1
        %s498 = smul.addr %s497, 32
        %s499 = scalar_lea.vmem [#allocation19], %s498
        %s500 = smul.u32 2, %s32
        %s501 = smul.u32 2, %s32
        %v502 = vld [vmem:[%s427] sm:$0xff]
        %v503 = vld [vmem:[%s427 + $0x8] sm:$0xff]
        %v504 = vld [vmem:[%s427 + $0x10] sm:$0xff]
        %v505 = vld [vmem:[%s427 + $0x18] sm:$0xff]
        %v506 = vld [vmem:[#allocation5] sm:$0xff]
        %v507 = vld [vmem:[#allocation5 + $0x8] sm:$0xff]
        %v508 = vld [vmem:[#allocation5 + $0x10] sm:$0xff]
        %v509 = vld [vmem:[#allocation5 + $0x18] sm:$0xff]
        %v510 = vld [vmem:[#allocation5 + $0x20] sm:$0xff]
        %v511 = vld [vmem:[#allocation5 + $0x28] sm:$0xff]
        %v512 = vld [vmem:[#allocation5 + $0x30] sm:$0xff]
        %v513 = vld [vmem:[#allocation5 + $0x38] sm:$0xff]
        %v514 = vld [vmem:[#allocation5 + $0x40] sm:$0xff]
        %v515 = vld [vmem:[#allocation5 + $0x48] sm:$0xff]
        %v516 = vld [vmem:[#allocation5 + $0x50] sm:$0xff]
        %v517 = vld [vmem:[#allocation5 + $0x58] sm:$0xff]
        %v518 = vld [vmem:[#allocation5 + $0x60] sm:$0xff]
        %v519 = vld [vmem:[#allocation5 + $0x68] sm:$0xff]
        %v520 = vld [vmem:[#allocation5 + $0x70] sm:$0xff]
        %v521 = vld [vmem:[#allocation5 + $0x78] sm:$0xff]
        %v522 = vld [vmem:[#allocation5 + $0x80] sm:$0xff]
        %v523 = vld [vmem:[#allocation5 + $0x88] sm:$0xff]
        %v524 = vld [vmem:[#allocation5 + $0x90] sm:$0xff]
        %v525 = vld [vmem:[#allocation5 + $0x98] sm:$0xff]
        %v526 = vld [vmem:[#allocation5 + $0xa0] sm:$0xff]
        %v527 = vld [vmem:[#allocation5 + $0xa8] sm:$0xff]
        %v528 = vld [vmem:[#allocation5 + $0xb0] sm:$0xff]
        %v529 = vld [vmem:[#allocation5 + $0xb8] sm:$0xff]
        %v530 = vld [vmem:[#allocation5 + $0xc0] sm:$0xff]
        %v531 = vld [vmem:[#allocation5 + $0xc8] sm:$0xff]
        %v532 = vld [vmem:[#allocation5 + $0xd0] sm:$0xff]
        %v533 = vld [vmem:[#allocation5 + $0xd8] sm:$0xff]
        %v534 = vld [vmem:[#allocation5 + $0xe0] sm:$0xff]
        %v535 = vld [vmem:[#allocation5 + $0xe8] sm:$0xff]
        %v536 = vld [vmem:[#allocation5 + $0xf0] sm:$0xff]
        %v537 = vld [vmem:[#allocation5 + $0xf8] sm:$0xff]
        %v538 = vld [vmem:[#allocation5 + $0x100] sm:$0xff]
        %v539 = vld [vmem:[#allocation5 + $0x108] sm:$0xff]
        %v540 = vld [vmem:[#allocation5 + $0x110] sm:$0xff]
        %v541 = vld [vmem:[#allocation5 + $0x118] sm:$0xff]
        %v542 = vld [vmem:[#allocation5 + $0x120] sm:$0xff]
        %v543 = vld [vmem:[#allocation5 + $0x128] sm:$0xff]
        %v544 = vld [vmem:[#allocation5 + $0x130] sm:$0xff]
        %v545 = vld [vmem:[#allocation5 + $0x138] sm:$0xff]
        %v546 = vld [vmem:[#allocation5 + $0x140] sm:$0xff]
        %v547 = vld [vmem:[#allocation5 + $0x148] sm:$0xff]
        %v548 = vld [vmem:[#allocation5 + $0x150] sm:$0xff]
        %v549 = vld [vmem:[#allocation5 + $0x158] sm:$0xff]
        %v550 = vld [vmem:[#allocation5 + $0x160] sm:$0xff]
        %v551 = vld [vmem:[#allocation5 + $0x168] sm:$0xff]
        %v552 = vld [vmem:[#allocation5 + $0x170] sm:$0xff]
        %v553 = vld [vmem:[#allocation5 + $0x178] sm:$0xff]
        %v554 = vld [vmem:[#allocation5 + $0x180] sm:$0xff]
        %v555 = vld [vmem:[#allocation5 + $0x188] sm:$0xff]
        %v556 = vld [vmem:[#allocation5 + $0x190] sm:$0xff]
        %v557 = vld [vmem:[#allocation5 + $0x198] sm:$0xff]
        %v558 = vld [vmem:[#allocation5 + $0x1a0] sm:$0xff]
        %v559 = vld [vmem:[#allocation5 + $0x1a8] sm:$0xff]
        %v560 = vld [vmem:[#allocation5 + $0x1b0] sm:$0xff]
        %v561 = vld [vmem:[#allocation5 + $0x1b8] sm:$0xff]
        %v562 = vld [vmem:[#allocation5 + $0x1c0] sm:$0xff]
        %v563 = vld [vmem:[#allocation5 + $0x1c8] sm:$0xff]
        %v564 = vld [vmem:[#allocation5 + $0x1d0] sm:$0xff]
        %v565 = vld [vmem:[#allocation5 + $0x1d8] sm:$0xff]
        %v566 = vld [vmem:[#allocation5 + $0x1e0] sm:$0xff]
        %v567 = vld [vmem:[#allocation5 + $0x1e8] sm:$0xff]
        %v568 = vld [vmem:[#allocation5 + $0x1f0] sm:$0xff]
        %v569 = vld [vmem:[#allocation5 + $0x1f8] sm:$0xff]
        %v570 = vld [vmem:[#allocation5 + $0x200] sm:$0xff]
        %v571 = vld [vmem:[#allocation5 + $0x208] sm:$0xff]
        %v572 = vld [vmem:[#allocation5 + $0x210] sm:$0xff]
        %v573 = vld [vmem:[#allocation5 + $0x218] sm:$0xff]
        %v574 = vld [vmem:[#allocation5 + $0x220] sm:$0xff]
        %v575 = vld [vmem:[#allocation5 + $0x228] sm:$0xff]
        %v576 = vld [vmem:[#allocation5 + $0x230] sm:$0xff]
        %v577 = vld [vmem:[#allocation5 + $0x238] sm:$0xff]
        %v578 = vld [vmem:[#allocation5 + $0x240] sm:$0xff]
        %v579 = vld [vmem:[#allocation5 + $0x248] sm:$0xff]
        %v580 = vld [vmem:[#allocation5 + $0x250] sm:$0xff]
        %v581 = vld [vmem:[#allocation5 + $0x258] sm:$0xff]
        %v582 = vld [vmem:[#allocation5 + $0x260] sm:$0xff]
        %v583 = vld [vmem:[#allocation5 + $0x268] sm:$0xff]
        %v584 = vld [vmem:[#allocation5 + $0x270] sm:$0xff]
        %v585 = vld [vmem:[#allocation5 + $0x278] sm:$0xff]
        %v586 = vld [vmem:[#allocation5 + $0x280] sm:$0xff]
        %v587 = vld [vmem:[#allocation5 + $0x288] sm:$0xff]
        %v588 = vld [vmem:[#allocation5 + $0x290] sm:$0xff]
        %v589 = vld [vmem:[#allocation5 + $0x298] sm:$0xff]
        %v590 = vld [vmem:[#allocation5 + $0x2a0] sm:$0xff]
        %v591 = vld [vmem:[#allocation5 + $0x2a8] sm:$0xff]
        %v592 = vld [vmem:[#allocation5 + $0x2b0] sm:$0xff]
        %v593 = vld [vmem:[#allocation5 + $0x2b8] sm:$0xff]
        %v594 = vld [vmem:[#allocation5 + $0x2c0] sm:$0xff]
        %v595 = vld [vmem:[#allocation5 + $0x2c8] sm:$0xff]
        %v596 = vld [vmem:[#allocation5 + $0x2d0] sm:$0xff]
        %v597 = vld [vmem:[#allocation5 + $0x2d8] sm:$0xff]
        %v598 = vld [vmem:[#allocation5 + $0x2e0] sm:$0xff]
        %v599 = vld [vmem:[#allocation5 + $0x2e8] sm:$0xff]
        %v600 = vld [vmem:[#allocation5 + $0x2f0] sm:$0xff]
        %v601 = vld [vmem:[#allocation5 + $0x2f8] sm:$0xff]
        %602 = vmatprep.subr.mxu0 %v507
        %603 = vmatpush1.msra.mxu0 %v506
        %604 = vmatprep.subr.mxu0 %v513
        %605 = vmatpush1.msra.mxu0 %v512
        %606 = vmatprep.subr.mxu0 %v519
        %607 = vmatpush1.msra.mxu0 %v518
        %608 = vmatprep.subr.mxu0 %v525
        %609 = vmatpush1.msra.mxu0 %v524
        %610 = vmatprep.subr.mxu0 %v531
        %611 = vmatpush1.msra.mxu0 %v530
        %612 = vmatprep.subr.mxu0 %v537
        %613 = vmatpush1.msra.mxu0 %v536
        %614 = vmatprep.subr.mxu0 %v543
        %615 = vmatpush1.msra.mxu0 %v542
        %616 = vmatprep.subr.mxu0 %v549
        %617 = vmatpush1.msra.mxu0 %v548
        %618 = vmatprep.subr.mxu0 %v555
        %619 = vmatpush1.msra.mxu0 %v554
        %620 = vmatprep.subr.mxu0 %v561
        %621 = vmatpush1.msra.mxu0 %v560
        %622 = vmatprep.subr.mxu0 %v567
        %623 = vmatpush1.msra.mxu0 %v566
        %624 = vmatprep.subr.mxu0 %v573
        %625 = vmatpush1.msra.mxu0 %v572
        %626 = vmatprep.subr.mxu0 %v579
        %627 = vmatpush1.msra.mxu0 %v578
        %628 = vmatprep.subr.mxu0 %v585
        %629 = vmatpush1.msra.mxu0 %v584
        %630 = vmatprep.subr.mxu0 %v591
        %631 = vmatpush1.msra.mxu0 %v590
        %632 = vmatprep.subr.mxu0 %v597
        %633 = vmatpush1.msra.mxu0 %v596
        %634 = vmatprep.subr.mxu0 0.0
        %635 = vmatpush1.msra.mxu0 0.0
        %636 = vmatprep.subr.mxu0 0.0
        %637 = vmatpush1.msra.mxu0 0.0
        %638 = vmatprep.subr.mxu0 0.0
        %639 = vmatpush1.msra.mxu0 0.0
        %640 = vmatprep.subr.mxu0 0.0
        %641 = vmatpush1.msra.mxu0 0.0
        %642 = vmatprep.subr.mxu0 0.0
        %643 = vmatpush1.msra.mxu0 0.0
        %644 = vmatprep.subr.mxu0 0.0
        %645 = vmatpush1.msra.mxu0 0.0
        %646 = vmatprep.subr.mxu0 0.0
        %647 = vmatpush1.msra.mxu0 0.0
        %648 = vmatprep.subr.mxu0 0.0
        %649 = vmatpush1.msra.mxu0 0.0
        %650 = vmatprep.subr.mxu0 0.0
        %651 = vmatpush1.msra.mxu0 0.0
        %652 = vmatprep.subr.mxu0 0.0
        %653 = vmatpush1.msra.mxu0 0.0
        %654 = vmatprep.subr.mxu0 0.0
        %655 = vmatpush1.msra.mxu0 0.0
        %656 = vmatprep.subr.mxu0 0.0
        %657 = vmatpush1.msra.mxu0 0.0
        %658 = vmatprep.subr.mxu0 0.0
        %659 = vmatpush1.msra.mxu0 0.0
        %660 = vmatprep.subr.mxu0 0.0
        %661 = vmatpush1.msra.mxu0 0.0
        %662 = vmatprep.subr.mxu0 0.0
        %663 = vmatpush1.msra.mxu0 0.0
        %664 = vmatprep.subr.mxu0 0.0
        %665 = vmatpush1.msra.mxu0 0.0
        %666 = vmatprep.mubr.f32.mxu0 0.0
        %667 = vmatmul.mubr.f32.gmra.mrb[0].mxu0 %v502
        %v668 = vpop.f32.mrb[0].mxu0
        %v669 = vadd.f32 0.0, %v668
        %v670 = vpop.f32.mrb[0].mxu0
        %v671 = vadd.f32 0.0, %v670
        %672 = vmatprep.mubr.f32.mxu0 0.0
        %673 = vmatmul.mubr.f32.gmra.mrb[0].mxu0 %v503
        %v674 = vpop.f32.mrb[0].mxu0
        %v675 = vadd.f32 0.0, %v674
        %v676 = vpop.f32.mrb[0].mxu0
        %v677 = vadd.f32 0.0, %v676
        %678 = vmatprep.mubr.f32.mxu0 0.0
        %679 = vmatmul.mubr.f32.gmra.mrb[0].mxu0 %v504
        %v680 = vpop.f32.mrb[0].mxu0
        %v681 = vadd.f32 0.0, %v680
        %v682 = vpop.f32.mrb[0].mxu0
        %v683 = vadd.f32 0.0, %v682
        %684 = vmatprep.mubr.f32.mxu0 0.0
        %685 = vmatmul.mubr.f32.gmra.mrb[0].mxu0 %v505
        %v686 = vpop.f32.mrb[0].mxu0
        %v687 = vadd.f32 0.0, %v686
        %v688 = vpop.f32.mrb[0].mxu0
        %v689 = vadd.f32 0.0, %v688
        %690 = vdwg.mxu0
        %691 = vmatprep.subr.mxu0 %v509
        %692 = vmatpush1.msra.mxu0 %v508
        %693 = vmatprep.subr.mxu0 %v515
        %694 = vmatpush1.msra.mxu0 %v514
        %695 = vmatprep.subr.mxu0 %v521
        %696 = vmatpush1.msra.mxu0 %v520
        %697 = vmatprep.subr.mxu0 %v527
        %698 = vmatpush1.msra.mxu0 %v526
        %699 = vmatprep.subr.mxu0 %v533
        %700 = vmatpush1.msra.mxu0 %v532
        %701 = vmatprep.subr.mxu0 %v539
        %702 = vmatpush1.msra.mxu0 %v538
        %703 = vmatprep.subr.mxu0 %v545
        %704 = vmatpush1.msra.mxu0 %v544
        %705 = vmatprep.subr.mxu0 %v551
        %706 = vmatpush1.msra.mxu0 %v550
        %707 = vmatprep.subr.mxu0 %v557
        %708 = vmatpush1.msra.mxu0 %v556
        %709 = vmatprep.subr.mxu0 %v563
        %710 = vmatpush1.msra.mxu0 %v562
        %711 = vmatprep.subr.mxu0 %v569
        %712 = vmatpush1.msra.mxu0 %v568
        %713 = vmatprep.subr.mxu0 %v575
        %714 = vmatpush1.msra.mxu0 %v574
        %715 = vmatprep.subr.mxu0 %v581
        %716 = vmatpush1.msra.mxu0 %v580
        %717 = vmatprep.subr.mxu0 %v587
        %718 = vmatpush1.msra.mxu0 %v586
        %719 = vmatprep.subr.mxu0 %v593
        %720 = vmatpush1.msra.mxu0 %v592
        %721 = vmatprep.subr.mxu0 %v599
        %722 = vmatpush1.msra.mxu0 %v598
        %723 = vmatprep.subr.mxu0 0.0
        %724 = vmatpush1.msra.mxu0 0.0
        %725 = vmatprep.subr.mxu0 0.0
        %726 = vmatpush1.msra.mxu0 0.0
        %727 = vmatprep.subr.mxu0 0.0
        %728 = vmatpush1.msra.mxu0 0.0
        %729 = vmatprep.subr.mxu0 0.0
        %730 = vmatpush1.msra.mxu0 0.0
        %731 = vmatprep.subr.mxu0 0.0
        %732 = vmatpush1.msra.mxu0 0.0
        %733 = vmatprep.subr.mxu0 0.0
        %734 = vmatpush1.msra.mxu0 0.0
        %735 = vmatprep.subr.mxu0 0.0
        %736 = vmatpush1.msra.mxu0 0.0
        %737 = vmatprep.subr.mxu0 0.0
        %738 = vmatpush1.msra.mxu0 0.0
        %739 = vmatprep.subr.mxu0 0.0
        %740 = vmatpush1.msra.mxu0 0.0
        %741 = vmatprep.subr.mxu0 0.0
        %742 = vmatpush1.msra.mxu0 0.0
        %743 = vmatprep.subr.mxu0 0.0
        %744 = vmatpush1.msra.mxu0 0.0
        %745 = vmatprep.subr.mxu0 0.0
        %746 = vmatpush1.msra.mxu0 0.0
        %747 = vmatprep.subr.mxu0 0.0
        %748 = vmatpush1.msra.mxu0 0.0
        %749 = vmatprep.subr.mxu0 0.0
        %750 = vmatpush1.msra.mxu0 0.0
        %751 = vmatprep.subr.mxu0 0.0
        %752 = vmatpush1.msra.mxu0 0.0
        %753 = vmatprep.subr.mxu0 0.0
        %754 = vmatpush1.msra.mxu0 0.0
        %755 = vmatprep.mubr.f32.mxu0 0.0
        %756 = vmatmul.mubr.f32.gmra.mrb[0].mxu0 %v502
        %v757 = vpop.f32.mrb[0].mxu0
        %v758 = vadd.f32 0.0, %v757
        %v759 = vpop.f32.mrb[0].mxu0
        %v760 = vadd.f32 0.0, %v759
        %761 = vmatprep.mubr.f32.mxu0 0.0
        %762 = vmatmul.mubr.f32.gmra.mrb[0].mxu0 %v503
        %v763 = vpop.f32.mrb[0].mxu0
        %v764 = vadd.f32 0.0, %v763
        %v765 = vpop.f32.mrb[0].mxu0
        %v766 = vadd.f32 0.0, %v765
        %767 = vmatprep.mubr.f32.mxu0 0.0
        %768 = vmatmul.mubr.f32.gmra.mrb[0].mxu0 %v504
        %v769 = vpop.f32.mrb[0].mxu0
        %v770 = vadd.f32 0.0, %v769
        %v771 = vpop.f32.mrb[0].mxu0
        %v772 = vadd.f32 0.0, %v771
        %773 = vmatprep.mubr.f32.mxu0 0.0
        %774 = vmatmul.mubr.f32.gmra.mrb[0].mxu0 %v505
        %v775 = vpop.f32.mrb[0].mxu0
        %v776 = vadd.f32 0.0, %v775
        %v777 = vpop.f32.mrb[0].mxu0
        %v778 = vadd.f32 0.0, %v777
        %779 = vdwg.mxu0
        %780 = vmatprep.subr.mxu0 %v511
        %781 = vmatpush1.msra.mxu0 %v510
        %782 = vmatprep.subr.mxu0 %v517
        %783 = vmatpush1.msra.mxu0 %v516
        %784 = vmatprep.subr.mxu0 %v523
        %785 = vmatpush1.msra.mxu0 %v522
        %786 = vmatprep.subr.mxu0 %v529
        %787 = vmatpush1.msra.mxu0 %v528
        %788 = vmatprep.subr.mxu0 %v535
        %789 = vmatpush1.msra.mxu0 %v534
        %790 = vmatprep.subr.mxu0 %v541
        %791 = vmatpush1.msra.mxu0 %v540
        %792 = vmatprep.subr.mxu0 %v547
        %793 = vmatpush1.msra.mxu0 %v546
        %794 = vmatprep.subr.mxu0 %v553
        %795 = vmatpush1.msra.mxu0 %v552
        %796 = vmatprep.subr.mxu0 %v559
        %797 = vmatpush1.msra.mxu0 %v558
        %798 = vmatprep.subr.mxu0 %v565
        %799 = vmatpush1.msra.mxu0 %v564
        %800 = vmatprep.subr.mxu0 %v571
        %801 = vmatpush1.msra.mxu0 %v570
        %802 = vmatprep.subr.mxu0 %v577
        %803 = vmatpush1.msra.mxu0 %v576
        %804 = vmatprep.subr.mxu0 %v583
        %805 = vmatpush1.msra.mxu0 %v582
        %806 = vmatprep.subr.mxu0 %v589
        %807 = vmatpush1.msra.mxu0 %v588
        %808 = vmatprep.subr.mxu0 %v595
        %809 = vmatpush1.msra.mxu0 %v594
        %810 = vmatprep.subr.mxu0 %v601
        %811 = vmatpush1.msra.mxu0 %v600
        %812 = vmatprep.subr.mxu0 0.0
        %813 = vmatpush1.msra.mxu0 0.0
        %814 = vmatprep.subr.mxu0 0.0
        %815 = vmatpush1.msra.mxu0 0.0
        %816 = vmatprep.subr.mxu0 0.0
        %817 = vmatpush1.msra.mxu0 0.0
        %818 = vmatprep.subr.mxu0 0.0
        %819 = vmatpush1.msra.mxu0 0.0
        %820 = vmatprep.subr.mxu0 0.0
        %821 = vmatpush1.msra.mxu0 0.0
        %822 = vmatprep.subr.mxu0 0.0
        %823 = vmatpush1.msra.mxu0 0.0
        %824 = vmatprep.subr.mxu0 0.0
        %825 = vmatpush1.msra.mxu0 0.0
        %826 = vmatprep.subr.mxu0 0.0
        %827 = vmatpush1.msra.mxu0 0.0
        %828 = vmatprep.subr.mxu0 0.0
        %829 = vmatpush1.msra.mxu0 0.0
        %830 = vmatprep.subr.mxu0 0.0
        %831 = vmatpush1.msra.mxu0 0.0
        %832 = vmatprep.subr.mxu0 0.0
        %833 = vmatpush1.msra.mxu0 0.0
        %834 = vmatprep.subr.mxu0 0.0
        %835 = vmatpush1.msra.mxu0 0.0
        %836 = vmatprep.subr.mxu0 0.0
        %837 = vmatpush1.msra.mxu0 0.0
        %838 = vmatprep.subr.mxu0 0.0
        %839 = vmatpush1.msra.mxu0 0.0
        %840 = vmatprep.subr.mxu0 0.0
        %841 = vmatpush1.msra.mxu0 0.0
        %842 = vmatprep.subr.mxu0 0.0
        %843 = vmatpush1.msra.mxu0 0.0
        %844 = vmatprep.mubr.f32.mxu0 0.0
        %845 = vmatmul.mubr.f32.gmra.mrb[0].mxu0 %v502
        %v846 = vpop.f32.mrb[0].mxu0
        %v847 = vadd.f32 0.0, %v846
        %v848 = vpop.f32.mrb[0].mxu0
        %v849 = vadd.f32 0.0, %v848
        %850 = vmatprep.mubr.f32.mxu0 0.0
        %851 = vmatmul.mubr.f32.gmra.mrb[0].mxu0 %v503
        %v852 = vpop.f32.mrb[0].mxu0
        %v853 = vadd.f32 0.0, %v852
        %v854 = vpop.f32.mrb[0].mxu0
        %v855 = vadd.f32 0.0, %v854
        %856 = vmatprep.mubr.f32.mxu0 0.0
        %857 = vmatmul.mubr.f32.gmra.mrb[0].mxu0 %v504
        %v858 = vpop.f32.mrb[0].mxu0
        %v859 = vadd.f32 0.0, %v858
        %v860 = vpop.f32.mrb[0].mxu0
        %v861 = vadd.f32 0.0, %v860
        %862 = vmatprep.mubr.f32.mxu0 0.0
        %863 = vmatmul.mubr.f32.gmra.mrb[0].mxu0 %v505
        %v864 = vpop.f32.mrb[0].mxu0
        %v865 = vadd.f32 0.0, %v864
        %v866 = vpop.f32.mrb[0].mxu0
        %v867 = vadd.f32 0.0, %v866
        %868 = vdwg.mxu0
        %v869 = vmul.f32 %v669, 0.088388346
        %v870 = vmul.f32 %v671, 0.088388346
        %v871 = vmul.f32 %v675, 0.088388346
        %v872 = vmul.f32 %v677, 0.088388346
        %v873 = vmul.f32 %v681, 0.088388346
        %v874 = vmul.f32 %v683, 0.088388346
        %v875 = vmul.f32 %v687, 0.088388346
        %v876 = vmul.f32 %v689, 0.088388346
        %877 = vmatprep.subr.mxu0 0.0
        %878 = vmatpush1.xpose.msra.mxu0 %v758
        %879 = vmatprep.subr.mxu0 0.0
        %880 = vmatpush1.xpose.msra.mxu0 %v764
        %881 = vmatprep.subr.mxu0 0.0
        %882 = vmatpush1.xpose.msra.mxu0 0.0
        %883 = vmatprep.subr.mxu0 0.0
        %884 = vmatpush1.xpose.msra.mxu0 0.0
        %885 = vmatprep.subr.mxu0 0.0
        %886 = vmatpush1.xpose.msra.mxu0 0.0
        %887 = vmatprep.subr.mxu0 0.0
        %888 = vmatpush1.xpose.msra.mxu0 0.0
        %889 = vmatprep.subr.mxu0 0.0
        %890 = vmatpush1.xpose.msra.mxu0 0.0
        %891 = vmatprep.subr.mxu0 0.0
        %892 = vmatpush1.xpose.msra.mxu0 0.0
        %893 = vmatprep.subr.mxu0 0.0
        %894 = vmatpush1.xpose.msra.mxu0 0.0
        %895 = vmatprep.subr.mxu0 0.0
        %896 = vmatpush1.xpose.msra.mxu0 0.0
        %897 = vmatprep.subr.mxu0 0.0
        %898 = vmatpush1.xpose.msra.mxu0 0.0
        %899 = vmatprep.subr.mxu0 0.0
        %900 = vmatpush1.xpose.msra.mxu0 0.0
        %901 = vmatprep.subr.mxu0 0.0
        %902 = vmatpush1.xpose.msra.mxu0 0.0
        %903 = vmatprep.subr.mxu0 0.0
        %904 = vmatpush1.xpose.msra.mxu0 0.0
        %905 = vmatprep.subr.mxu0 0.0
        %906 = vmatpush1.xpose.msra.mxu0 0.0
        %907 = vmatprep.subr.mxu0 0.0
        %908 = vmatpush1.xpose.msra.mxu0 0.0
        %909 = vmatprep.subr.mxu0 0.0
        %910 = vmatpush1.xpose.msra.mxu0 0.0
        %911 = vmatprep.subr.mxu0 0.0
        %912 = vmatpush1.xpose.msra.mxu0 0.0
        %913 = vmatprep.subr.mxu0 0.0
        %914 = vmatpush1.xpose.msra.mxu0 0.0
        %915 = vmatprep.subr.mxu0 0.0
        %916 = vmatpush1.xpose.msra.mxu0 0.0
        %917 = vmatprep.subr.mxu0 0.0
        %918 = vmatpush1.xpose.msra.mxu0 0.0
        %919 = vmatprep.subr.mxu0 0.0
        %920 = vmatpush1.xpose.msra.mxu0 0.0
        %921 = vmatprep.subr.mxu0 0.0
        %922 = vmatpush1.xpose.msra.mxu0 0.0
        %923 = vmatprep.subr.mxu0 0.0
        %924 = vmatpush1.xpose.msra.mxu0 0.0
        %925 = vmatprep.subr.mxu0 0.0
        %926 = vmatpush1.xpose.msra.mxu0 0.0
        %927 = vmatprep.subr.mxu0 0.0
        %928 = vmatpush1.xpose.msra.mxu0 0.0
        %929 = vmatprep.subr.mxu0 0.0
        %930 = vmatpush1.xpose.msra.mxu0 0.0
        %931 = vmatprep.subr.mxu0 0.0
        %932 = vmatpush1.xpose.msra.mxu0 0.0
        %933 = vmatprep.subr.mxu0 0.0
        %934 = vmatpush1.xpose.msra.mxu0 0.0
        %935 = vmatprep.subr.mxu0 0.0
        %936 = vmatpush1.xpose.msra.mxu0 0.0
        %937 = vmatprep.subr.mxu0 0.0
        %938 = vmatpush1.xpose.msra.mxu0 0.0
        %939 = vmatprep.subr.mxu0 0.0
        %940 = vmatpush1.xpose.msra.mxu0 0.0
        %941 = vmatprep.mubr.f32.mxu0 0.0
        %942 = vmatmul.mubr.f32.gmra.mrb[0].mxu0 %v869
        %v943 = vpop.f32.mrb[0].mxu0
        %v944 = vadd.f32 0.0, %v943
        %v945 = vpop.f32.mrb[0].mxu0
        %946 = vmatprep.mubr.f32.mxu0 0.0
        %947 = vmatmul.mubr.f32.gmra.mrb[0].mxu0 %v871
        %v948 = vpop.f32.mrb[0].mxu0
        %v949 = vadd.f32 0.0, %v948
        %v950 = vpop.f32.mrb[0].mxu0
        %951 = vdwg.mxu0
        %952 = vmatprep.subr.mxu0 0.0
        %953 = vmatpush1.xpose.msra.mxu0 %v770
        %954 = vmatprep.subr.mxu0 0.0
        %955 = vmatpush1.xpose.msra.mxu0 %v776
        %956 = vmatprep.subr.mxu0 0.0
        %957 = vmatpush1.xpose.msra.mxu0 0.0
        %958 = vmatprep.subr.mxu0 0.0
        %959 = vmatpush1.xpose.msra.mxu0 0.0
        %960 = vmatprep.subr.mxu0 0.0
        %961 = vmatpush1.xpose.msra.mxu0 0.0
        %962 = vmatprep.subr.mxu0 0.0
        %963 = vmatpush1.xpose.msra.mxu0 0.0
        %964 = vmatprep.subr.mxu0 0.0
        %965 = vmatpush1.xpose.msra.mxu0 0.0
        %966 = vmatprep.subr.mxu0 0.0
        %967 = vmatpush1.xpose.msra.mxu0 0.0
        %968 = vmatprep.subr.mxu0 0.0
        %969 = vmatpush1.xpose.msra.mxu0 0.0
        %970 = vmatprep.subr.mxu0 0.0
        %971 = vmatpush1.xpose.msra.mxu0 0.0
        %972 = vmatprep.subr.mxu0 0.0
        %973 = vmatpush1.xpose.msra.mxu0 0.0
        %974 = vmatprep.subr.mxu0 0.0
        %975 = vmatpush1.xpose.msra.mxu0 0.0
        %976 = vmatprep.subr.mxu0 0.0
        %977 = vmatpush1.xpose.msra.mxu0 0.0
        %978 = vmatprep.subr.mxu0 0.0
        %979 = vmatpush1.xpose.msra.mxu0 0.0
        %980 = vmatprep.subr.mxu0 0.0
        %981 = vmatpush1.xpose.msra.mxu0 0.0
        %982 = vmatprep.subr.mxu0 0.0
        %983 = vmatpush1.xpose.msra.mxu0 0.0
        %984 = vmatprep.subr.mxu0 0.0
        %985 = vmatpush1.xpose.msra.mxu0 0.0
        %986 = vmatprep.subr.mxu0 0.0
        %987 = vmatpush1.xpose.msra.mxu0 0.0
        %988 = vmatprep.subr.mxu0 0.0
        %989 = vmatpush1.xpose.msra.mxu0 0.0
        %990 = vmatprep.subr.mxu0 0.0
        %991 = vmatpush1.xpose.msra.mxu0 0.0
        %992 = vmatprep.subr.mxu0 0.0
        %993 = vmatpush1.xpose.msra.mxu0 0.0
        %994 = vmatprep.subr.mxu0 0.0
        %995 = vmatpush1.xpose.msra.mxu0 0.0
        %996 = vmatprep.subr.mxu0 0.0
        %997 = vmatpush1.xpose.msra.mxu0 0.0
        %998 = vmatprep.subr.mxu0 0.0
        %999 = vmatpush1.xpose.msra.mxu0 0.0
        %1000 = vmatprep.subr.mxu0 0.0
        %1001 = vmatpush1.xpose.msra.mxu0 0.0
        %1002 = vmatprep.subr.mxu0 0.0
        %1003 = vmatpush1.xpose.msra.mxu0 0.0
        %1004 = vmatprep.subr.mxu0 0.0
        %1005 = vmatpush1.xpose.msra.mxu0 0.0
        %1006 = vmatprep.subr.mxu0 0.0
        %1007 = vmatpush1.xpose.msra.mxu0 0.0
        %1008 = vmatprep.subr.mxu0 0.0
        %1009 = vmatpush1.xpose.msra.mxu0 0.0
        %1010 = vmatprep.subr.mxu0 0.0
        %1011 = vmatpush1.xpose.msra.mxu0 0.0
        %1012 = vmatprep.subr.mxu0 0.0
        %1013 = vmatpush1.xpose.msra.mxu0 0.0
        %1014 = vmatprep.subr.mxu0 0.0
        %1015 = vmatpush1.xpose.msra.mxu0 0.0
        %1016 = vmatprep.mubr.f32.mxu0 0.0
        %1017 = vmatmul.mubr.f32.gmra.mrb[0].mxu0 %v873
        %v1018 = vpop.f32.mrb[0].mxu0
        %v1019 = vadd.f32 0.0, %v1018
        %v1020 = vpop.f32.mrb[0].mxu0
        %1021 = vmatprep.mubr.f32.mxu0 0.0
        %1022 = vmatmul.mubr.f32.gmra.mrb[0].mxu0 %v875
        %v1023 = vpop.f32.mrb[0].mxu0
        %v1024 = vadd.f32 0.0, %v1023
        %v1025 = vpop.f32.mrb[0].mxu0
        %1026 = vdwg.mxu0
        %vm1027 = vcmask 130048
        %v1028 = vsel %vm1027, %v944, -inf
        %1029 = vmax.xlane.f32.xlu0 %v1028
        %v1030 = vpop.xlane.xlu0 %1029
        %v1031 = vsel %vm1027, %v949, -inf
        %1032 = vmax.xlane.f32.xlu0 %v1031
        %v1033 = vpop.xlane.xlu0 %1032
        %v1034 = vsel %vm1027, %v1019, -inf
        %1035 = vmax.xlane.f32.xlu0 %v1034
        %v1036 = vpop.xlane.xlu0 %1035
        %v1037 = vsel %vm1027, %v1024, -inf
        %1038 = vmax.xlane.f32.xlu0 %v1037
        %v1039 = vpop.xlane.xlu0 %1038
        %v1040 = vsub.f32 %v944, %v1030
        %v1041 = vsub.f32 %v949, %v1033
        %v1042 = vsub.f32 %v1019, %v1036
        %v1043 = vsub.f32 %v1024, %v1039
        %v1044 = vmul.f32 %v1040, 1.442695
        %v1045 = vpow.pop %v1044
        %v1046 = vmul.f32 %v1041, 1.442695
        %v1047 = vpow.pop %v1046
        %v1048 = vmul.f32 %v1042, 1.442695
        %v1049 = vpow.pop %v1048
        %v1050 = vmul.f32 %v1043, 1.442695
        %v1051 = vpow.pop %v1050
        %v1052 = vsel %vm1027, %v1045, 0.0
        %1053 = vadd.xlane.f32.xlu0 %v1052
        %v1054 = vpop.xlane.xlu0 %1053
        %v1055 = vsel %vm1027, %v1047, 0.0
        %1056 = vadd.xlane.f32.xlu0 %v1055
        %v1057 = vpop.xlane.xlu0 %1056
        %v1058 = vsel %vm1027, %v1049, 0.0
        %1059 = vadd.xlane.f32.xlu0 %v1058
        %v1060 = vpop.xlane.xlu0 %1059
        %v1061 = vsel %vm1027, %v1051, 0.0
        %1062 = vadd.xlane.f32.xlu0 %v1061
        %v1063 = vpop.xlane.xlu0 %1062
        %v1064 = vrcp.pop %v1054
        %v1065 = vrcp.pop %v1057
        %v1066 = vrcp.pop %v1060
        %v1067 = vrcp.pop %v1063
        %v1068 = vmul.f32 %v1045, %v1064
        %v1069 = vmul.f32 %v1047, %v1065
        %v1070 = vmul.f32 %v1049, %v1066
        %v1071 = vmul.f32 %v1051, %v1067
        %v1073 = vsel %vm1027, %v1068, 0
        %v1076 = vsel %vm1027, %v1069, 0
        %1078 = vmatprep.subr.mxu0 0.0
        %1079 = vmatpush1.msra.mxu0 %v847
        %1080 = vmatprep.subr.mxu0 0.0
        %1081 = vmatpush1.msra.mxu0 %v853
        %1082 = vmatprep.subr.mxu0 0.0
        %1083 = vmatpush1.msra.mxu0 0.0
        %1084 = vmatprep.subr.mxu0 0.0
        %1085 = vmatpush1.msra.mxu0 0.0
        %1086 = vmatprep.subr.mxu0 0.0
        %1087 = vmatpush1.msra.mxu0 0.0
        %1088 = vmatprep.subr.mxu0 0.0
        %1089 = vmatpush1.msra.mxu0 0.0
        %1090 = vmatprep.subr.mxu0 0.0
        %1091 = vmatpush1.msra.mxu0 0.0
        %1092 = vmatprep.subr.mxu0 0.0
        %1093 = vmatpush1.msra.mxu0 0.0
        %1094 = vmatprep.subr.mxu0 0.0
        %1095 = vmatpush1.msra.mxu0 0.0
        %1096 = vmatprep.subr.mxu0 0.0
        %1097 = vmatpush1.msra.mxu0 0.0
        %1098 = vmatprep.subr.mxu0 0.0
        %1099 = vmatpush1.msra.mxu0 0.0
        %1100 = vmatprep.subr.mxu0 0.0
        %1101 = vmatpush1.msra.mxu0 0.0
        %1102 = vmatprep.subr.mxu0 0.0
        %1103 = vmatpush1.msra.mxu0 0.0
        %1104 = vmatprep.subr.mxu0 0.0
        %1105 = vmatpush1.msra.mxu0 0.0
        %1106 = vmatprep.subr.mxu0 0.0
        %1107 = vmatpush1.msra.mxu0 0.0
        %1108 = vmatprep.subr.mxu0 0.0
        %1109 = vmatpush1.msra.mxu0 0.0
        %1110 = vmatprep.subr.mxu0 0.0
        %1111 = vmatpush1.msra.mxu0 0.0
        %1112 = vmatprep.subr.mxu0 0.0
        %1113 = vmatpush1.msra.mxu0 0.0
        %1114 = vmatprep.subr.mxu0 0.0
        %1115 = vmatpush1.msra.mxu0 0.0
        %1116 = vmatprep.subr.mxu0 0.0
        %1117 = vmatpush1.msra.mxu0 0.0
        %1118 = vmatprep.subr.mxu0 0.0
        %1119 = vmatpush1.msra.mxu0 0.0
        %1120 = vmatprep.subr.mxu0 0.0
        %1121 = vmatpush1.msra.mxu0 0.0
        %1122 = vmatprep.subr.mxu0 0.0
        %1123 = vmatpush1.msra.mxu0 0.0
        %1124 = vmatprep.subr.mxu0 0.0
        %1125 = vmatpush1.msra.mxu0 0.0
        %1126 = vmatprep.subr.mxu0 0.0
        %1127 = vmatpush1.msra.mxu0 0.0
        %1128 = vmatprep.subr.mxu0 0.0
        %1129 = vmatpush1.msra.mxu0 0.0
        %1130 = vmatprep.subr.mxu0 0.0
        %1131 = vmatpush1.msra.mxu0 0.0
        %1132 = vmatprep.subr.mxu0 0.0
        %1133 = vmatpush1.msra.mxu0 0.0
        %1134 = vmatprep.subr.mxu0 0.0
        %1135 = vmatpush1.msra.mxu0 0.0
        %1136 = vmatprep.subr.mxu0 0.0
        %1137 = vmatpush1.msra.mxu0 0.0
        %1138 = vmatprep.subr.mxu0 0.0
        %1139 = vmatpush1.msra.mxu0 0.0
        %1140 = vmatprep.subr.mxu0 0.0
        %1141 = vmatpush1.msra.mxu0 0.0
        %1142 = vmatprep.mubr.f32.mxu0 0.0
        %1143 = vmatmul.mubr.f32.gmra.mrb[0].mxu0 %v1073
        %v1144 = vpop.f32.mrb[0].mxu0
        %v1145 = vadd.f32 0.0, %v1144
        %v1146 = vpop.f32.mrb[0].mxu0
        %1147 = vmatprep.mubr.f32.mxu0 0.0
        %1148 = vmatmul.mubr.f32.gmra.mrb[0].mxu0 %v1076
        %v1149 = vpop.f32.mrb[0].mxu0
        %v1150 = vadd.f32 0.0, %v1149
        %v1151 = vpop.f32.mrb[0].mxu0
        %1152 = vdwg.mxu0
        %v1154 = vsel %vm1027, %v1070, 0
        %v1157 = vsel %vm1027, %v1071, 0
        %1159 = vmatprep.subr.mxu0 0.0
        %1160 = vmatpush1.msra.mxu0 %v859
        %1161 = vmatprep.subr.mxu0 0.0
        %1162 = vmatpush1.msra.mxu0 %v865
        %1163 = vmatprep.subr.mxu0 0.0
        %1164 = vmatpush1.msra.mxu0 0.0
        %1165 = vmatprep.subr.mxu0 0.0
        %1166 = vmatpush1.msra.mxu0 0.0
        %1167 = vmatprep.subr.mxu0 0.0
        %1168 = vmatpush1.msra.mxu0 0.0
        %1169 = vmatprep.subr.mxu0 0.0
        %1170 = vmatpush1.msra.mxu0 0.0
        %1171 = vmatprep.subr.mxu0 0.0
        %1172 = vmatpush1.msra.mxu0 0.0
        %1173 = vmatprep.subr.mxu0 0.0
        %1174 = vmatpush1.msra.mxu0 0.0
        %1175 = vmatprep.subr.mxu0 0.0
        %1176 = vmatpush1.msra.mxu0 0.0
        %1177 = vmatprep.subr.mxu0 0.0
        %1178 = vmatpush1.msra.mxu0 0.0
        %1179 = vmatprep.subr.mxu0 0.0
        %1180 = vmatpush1.msra.mxu0 0.0
        %1181 = vmatprep.subr.mxu0 0.0
        %1182 = vmatpush1.msra.mxu0 0.0
        %1183 = vmatprep.subr.mxu0 0.0
        %1184 = vmatpush1.msra.mxu0 0.0
        %1185 = vmatprep.subr.mxu0 0.0
        %1186 = vmatpush1.msra.mxu0 0.0
        %1187 = vmatprep.subr.mxu0 0.0
        %1188 = vmatpush1.msra.mxu0 0.0
        %1189 = vmatprep.subr.mxu0 0.0
        %1190 = vmatpush1.msra.mxu0 0.0
        %1191 = vmatprep.subr.mxu0 0.0
        %1192 = vmatpush1.msra.mxu0 0.0
        %1193 = vmatprep.subr.mxu0 0.0
        %1194 = vmatpush1.msra.mxu0 0.0
        %1195 = vmatprep.subr.mxu0 0.0
        %1196 = vmatpush1.msra.mxu0 0.0
        %1197 = vmatprep.subr.mxu0 0.0
        %1198 = vmatpush1.msra.mxu0 0.0
        %1199 = vmatprep.subr.mxu0 0.0
        %1200 = vmatpush1.msra.mxu0 0.0
        %1201 = vmatprep.subr.mxu0 0.0
        %1202 = vmatpush1.msra.mxu0 0.0
        %1203 = vmatprep.subr.mxu0 0.0
        %1204 = vmatpush1.msra.mxu0 0.0
        %1205 = vmatprep.subr.mxu0 0.0
        %1206 = vmatpush1.msra.mxu0 0.0
        %1207 = vmatprep.subr.mxu0 0.0
        %1208 = vmatpush1.msra.mxu0 0.0
        %1209 = vmatprep.subr.mxu0 0.0
        %1210 = vmatpush1.msra.mxu0 0.0
        %1211 = vmatprep.subr.mxu0 0.0
        %1212 = vmatpush1.msra.mxu0 0.0
        %1213 = vmatprep.subr.mxu0 0.0
        %1214 = vmatpush1.msra.mxu0 0.0
        %1215 = vmatprep.subr.mxu0 0.0
        %1216 = vmatpush1.msra.mxu0 0.0
        %1217 = vmatprep.subr.mxu0 0.0
        %1218 = vmatpush1.msra.mxu0 0.0
        %1219 = vmatprep.subr.mxu0 0.0
        %1220 = vmatpush1.msra.mxu0 0.0
        %1221 = vmatprep.subr.mxu0 0.0
        %1222 = vmatpush1.msra.mxu0 0.0
        %1223 = vmatprep.mubr.f32.mxu0 0.0
        %1224 = vmatmul.mubr.f32.gmra.mrb[0].mxu0 %v1154
        %v1225 = vpop.f32.mrb[0].mxu0
        %v1226 = vadd.f32 0.0, %v1225
        %v1227 = vpop.f32.mrb[0].mxu0
        %1228 = vmatprep.mubr.f32.mxu0 0.0
        %1229 = vmatmul.mubr.f32.gmra.mrb[0].mxu0 %v1157
        %v1230 = vpop.f32.mrb[0].mxu0
        %v1231 = vadd.f32 0.0, %v1230
        %v1232 = vpop.f32.mrb[0].mxu0
        %1233 = vdwg.mxu0
        %1234 = vmatprep.subr.mxu0 0.0
        %1235 = vmatpush1.xpose.msra.mxu0 %v760
        %1236 = vmatprep.subr.mxu0 0.0
        %1237 = vmatpush1.xpose.msra.mxu0 %v766
        %1238 = vmatprep.subr.mxu0 0.0
        %1239 = vmatpush1.xpose.msra.mxu0 0.0
        %1240 = vmatprep.subr.mxu0 0.0
        %1241 = vmatpush1.xpose.msra.mxu0 0.0
        %1242 = vmatprep.subr.mxu0 0.0
        %1243 = vmatpush1.xpose.msra.mxu0 0.0
        %1244 = vmatprep.subr.mxu0 0.0
        %1245 = vmatpush1.xpose.msra.mxu0 0.0
        %1246 = vmatprep.subr.mxu0 0.0
        %1247 = vmatpush1.xpose.msra.mxu0 0.0
        %1248 = vmatprep.subr.mxu0 0.0
        %1249 = vmatpush1.xpose.msra.mxu0 0.0
        %1250 = vmatprep.subr.mxu0 0.0
        %1251 = vmatpush1.xpose.msra.mxu0 0.0
        %1252 = vmatprep.subr.mxu0 0.0
        %1253 = vmatpush1.xpose.msra.mxu0 0.0
        %1254 = vmatprep.subr.mxu0 0.0
        %1255 = vmatpush1.xpose.msra.mxu0 0.0
        %1256 = vmatprep.subr.mxu0 0.0
        %1257 = vmatpush1.xpose.msra.mxu0 0.0
        %1258 = vmatprep.subr.mxu0 0.0
        %1259 = vmatpush1.xpose.msra.mxu0 0.0
        %1260 = vmatprep.subr.mxu0 0.0
        %1261 = vmatpush1.xpose.msra.mxu0 0.0
        %1262 = vmatprep.subr.mxu0 0.0
        %1263 = vmatpush1.xpose.msra.mxu0 0.0
        %1264 = vmatprep.subr.mxu0 0.0
        %1265 = vmatpush1.xpose.msra.mxu0 0.0
        %1266 = vmatprep.subr.mxu0 0.0
        %1267 = vmatpush1.xpose.msra.mxu0 0.0
        %1268 = vmatprep.subr.mxu0 0.0
        %1269 = vmatpush1.xpose.msra.mxu0 0.0
        %1270 = vmatprep.subr.mxu0 0.0
        %1271 = vmatpush1.xpose.msra.mxu0 0.0
        %1272 = vmatprep.subr.mxu0 0.0
        %1273 = vmatpush1.xpose.msra.mxu0 0.0
        %1274 = vmatprep.subr.mxu0 0.0
        %1275 = vmatpush1.xpose.msra.mxu0 0.0
        %1276 = vmatprep.subr.mxu0 0.0
        %1277 = vmatpush1.xpose.msra.mxu0 0.0
        %1278 = vmatprep.subr.mxu0 0.0
        %1279 = vmatpush1.xpose.msra.mxu0 0.0
        %1280 = vmatprep.subr.mxu0 0.0
        %1281 = vmatpush1.xpose.msra.mxu0 0.0
        %1282 = vmatprep.subr.mxu0 0.0
        %1283 = vmatpush1.xpose.msra.mxu0 0.0
        %1284 = vmatprep.subr.mxu0 0.0
        %1285 = vmatpush1.xpose.msra.mxu0 0.0
        %1286 = vmatprep.subr.mxu0 0.0
        %1287 = vmatpush1.xpose.msra.mxu0 0.0
        %1288 = vmatprep.subr.mxu0 0.0
        %1289 = vmatpush1.xpose.msra.mxu0 0.0
        %1290 = vmatprep.subr.mxu0 0.0
        %1291 = vmatpush1.xpose.msra.mxu0 0.0
        %1292 = vmatprep.subr.mxu0 0.0
        %1293 = vmatpush1.xpose.msra.mxu0 0.0
        %1294 = vmatprep.subr.mxu0 0.0
        %1295 = vmatpush1.xpose.msra.mxu0 0.0
        %1296 = vmatprep.subr.mxu0 0.0
        %1297 = vmatpush1.xpose.msra.mxu0 0.0
        %1298 = vmatprep.mubr.f32.mxu0 0.0
        %1299 = vmatmul.mubr.f32.gmra.mrb[0].mxu0 %v870
        %v1300 = vpop.f32.mrb[0].mxu0
        %v1301 = vadd.f32 0.0, %v1300
        %v1302 = vpop.f32.mrb[0].mxu0
        %1303 = vmatprep.mubr.f32.mxu0 0.0
        %1304 = vmatmul.mubr.f32.gmra.mrb[0].mxu0 %v872
        %v1305 = vpop.f32.mrb[0].mxu0
        %v1306 = vadd.f32 0.0, %v1305
        %v1307 = vpop.f32.mrb[0].mxu0
        %1308 = vdwg.mxu0
        %1309 = vmatprep.subr.mxu0 0.0
        %1310 = vmatpush1.xpose.msra.mxu0 %v772
        %1311 = vmatprep.subr.mxu0 0.0
        %1312 = vmatpush1.xpose.msra.mxu0 %v778
        %1313 = vmatprep.subr.mxu0 0.0
        %1314 = vmatpush1.xpose.msra.mxu0 0.0
        %1315 = vmatprep.subr.mxu0 0.0
        %1316 = vmatpush1.xpose.msra.mxu0 0.0
        %1317 = vmatprep.subr.mxu0 0.0
        %1318 = vmatpush1.xpose.msra.mxu0 0.0
        %1319 = vmatprep.subr.mxu0 0.0
        %1320 = vmatpush1.xpose.msra.mxu0 0.0
        %1321 = vmatprep.subr.mxu0 0.0
        %1322 = vmatpush1.xpose.msra.mxu0 0.0
        %1323 = vmatprep.subr.mxu0 0.0
        %1324 = vmatpush1.xpose.msra.mxu0 0.0
        %1325 = vmatprep.subr.mxu0 0.0
        %1326 = vmatpush1.xpose.msra.mxu0 0.0
        %1327 = vmatprep.subr.mxu0 0.0
        %1328 = vmatpush1.xpose.msra.mxu0 0.0
        %1329 = vmatprep.subr.mxu0 0.0
        %1330 = vmatpush1.xpose.msra.mxu0 0.0
        %1331 = vmatprep.subr.mxu0 0.0
        %1332 = vmatpush1.xpose.msra.mxu0 0.0
        %1333 = vmatprep.subr.mxu0 0.0
        %1334 = vmatpush1.xpose.msra.mxu0 0.0
        %1335 = vmatprep.subr.mxu0 0.0
        %1336 = vmatpush1.xpose.msra.mxu0 0.0
        %1337 = vmatprep.subr.mxu0 0.0
        %1338 = vmatpush1.xpose.msra.mxu0 0.0
        %1339 = vmatprep.subr.mxu0 0.0
        %1340 = vmatpush1.xpose.msra.mxu0 0.0
        %1341 = vmatprep.subr.mxu0 0.0
        %1342 = vmatpush1.xpose.msra.mxu0 0.0
        %1343 = vmatprep.subr.mxu0 0.0
        %1344 = vmatpush1.xpose.msra.mxu0 0.0
        %1345 = vmatprep.subr.mxu0 0.0
        %1346 = vmatpush1.xpose.msra.mxu0 0.0
        %1347 = vmatprep.subr.mxu0 0.0
        %1348 = vmatpush1.xpose.msra.mxu0 0.0
        %1349 = vmatprep.subr.mxu0 0.0
        %1350 = vmatpush1.xpose.msra.mxu0 0.0
        %1351 = vmatprep.subr.mxu0 0.0
        %1352 = vmatpush1.xpose.msra.mxu0 0.0
        %1353 = vmatprep.subr.mxu0 0.0
        %1354 = vmatpush1.xpose.msra.mxu0 0.0
        %1355 = vmatprep.subr.mxu0 0.0
        %1356 = vmatpush1.xpose.msra.mxu0 0.0
        %1357 = vmatprep.subr.mxu0 0.0
        %1358 = vmatpush1.xpose.msra.mxu0 0.0
        %1359 = vmatprep.subr.mxu0 0.0
        %1360 = vmatpush1.xpose.msra.mxu0 0.0
        %1361 = vmatprep.subr.mxu0 0.0
        %1362 = vmatpush1.xpose.msra.mxu0 0.0
        %1363 = vmatprep.subr.mxu0 0.0
        %1364 = vmatpush1.xpose.msra.mxu0 0.0
        %1365 = vmatprep.subr.mxu0 0.0
        %1366 = vmatpush1.xpose.msra.mxu0 0.0
        %1367 = vmatprep.subr.mxu0 0.0
        %1368 = vmatpush1.xpose.msra.mxu0 0.0
        %1369 = vmatprep.subr.mxu0 0.0
        %1370 = vmatpush1.xpose.msra.mxu0 0.0
        %1371 = vmatprep.subr.mxu0 0.0
        %1372 = vmatpush1.xpose.msra.mxu0 0.0
        %1373 = vmatprep.mubr.f32.mxu0 0.0
        %1374 = vmatmul.mubr.f32.gmra.mrb[0].mxu0 %v874
        %v1375 = vpop.f32.mrb[0].mxu0
        %v1376 = vadd.f32 0.0, %v1375
        %v1377 = vpop.f32.mrb[0].mxu0
        %1378 = vmatprep.mubr.f32.mxu0 0.0
        %1379 = vmatmul.mubr.f32.gmra.mrb[0].mxu0 %v876
        %v1380 = vpop.f32.mrb[0].mxu0
        %v1381 = vadd.f32 0.0, %v1380
        %v1382 = vpop.f32.mrb[0].mxu0
        %1383 = vdwg.mxu0
        %v1384 = vsel %vm1027, %v1301, -inf
        %1385 = vmax.xlane.f32.xlu0 %v1384
        %v1386 = vpop.xlane.xlu0 %1385
        %v1387 = vsel %vm1027, %v1306, -inf
        %1388 = vmax.xlane.f32.xlu0 %v1387
        %v1389 = vpop.xlane.xlu0 %1388
        %v1390 = vsel %vm1027, %v1376, -inf
        %1391 = vmax.xlane.f32.xlu0 %v1390
        %v1392 = vpop.xlane.xlu0 %1391
        %v1393 = vsel %vm1027, %v1381, -inf
        %1394 = vmax.xlane.f32.xlu0 %v1393
        %v1395 = vpop.xlane.xlu0 %1394
        %v1396 = vsub.f32 %v1301, %v1386
        %v1397 = vsub.f32 %v1306, %v1389
        %v1398 = vsub.f32 %v1376, %v1392
        %v1399 = vsub.f32 %v1381, %v1395
        %v1400 = vmul.f32 %v1396, 1.442695
        %v1401 = vpow.pop %v1400
        %v1402 = vmul.f32 %v1397, 1.442695
        %v1403 = vpow.pop %v1402
        %v1404 = vmul.f32 %v1398, 1.442695
        %v1405 = vpow.pop %v1404
        %v1406 = vmul.f32 %v1399, 1.442695
        %v1407 = vpow.pop %v1406
        %v1408 = vsel %vm1027, %v1401, 0.0
        %1409 = vadd.xlane.f32.xlu0 %v1408
        %v1410 = vpop.xlane.xlu0 %1409
        %v1411 = vsel %vm1027, %v1403, 0.0
        %1412 = vadd.xlane.f32.xlu0 %v1411
        %v1413 = vpop.xlane.xlu0 %1412
        %v1414 = vsel %vm1027, %v1405, 0.0
        %1415 = vadd.xlane.f32.xlu0 %v1414
        %v1416 = vpop.xlane.xlu0 %1415
        %v1417 = vsel %vm1027, %v1407, 0.0
        %1418 = vadd.xlane.f32.xlu0 %v1417
        %v1419 = vpop.xlane.xlu0 %1418
        %v1420 = vrcp.pop %v1410
        %v1421 = vrcp.pop %v1413
        %v1422 = vrcp.pop %v1416
        %v1423 = vrcp.pop %v1419
        %v1424 = vmul.f32 %v1401, %v1420
        %v1425 = vmul.f32 %v1403, %v1421
        %v1426 = vmul.f32 %v1405, %v1422
        %v1427 = vmul.f32 %v1407, %v1423
        %v1429 = vsel %vm1027, %v1424, 0
        %v1432 = vsel %vm1027, %v1425, 0
        %1434 = vmatprep.subr.mxu0 0.0
        %1435 = vmatpush1.msra.mxu0 %v849
        %1436 = vmatprep.subr.mxu0 0.0
        %1437 = vmatpush1.msra.mxu0 %v855
        %1438 = vmatprep.subr.mxu0 0.0
        %1439 = vmatpush1.msra.mxu0 0.0
        %1440 = vmatprep.subr.mxu0 0.0
        %1441 = vmatpush1.msra.mxu0 0.0
        %1442 = vmatprep.subr.mxu0 0.0
        %1443 = vmatpush1.msra.mxu0 0.0
        %1444 = vmatprep.subr.mxu0 0.0
        %1445 = vmatpush1.msra.mxu0 0.0
        %1446 = vmatprep.subr.mxu0 0.0
        %1447 = vmatpush1.msra.mxu0 0.0
        %1448 = vmatprep.subr.mxu0 0.0
        %1449 = vmatpush1.msra.mxu0 0.0
        %1450 = vmatprep.subr.mxu0 0.0
        %1451 = vmatpush1.msra.mxu0 0.0
        %1452 = vmatprep.subr.mxu0 0.0
        %1453 = vmatpush1.msra.mxu0 0.0
        %1454 = vmatprep.subr.mxu0 0.0
        %1455 = vmatpush1.msra.mxu0 0.0
        %1456 = vmatprep.subr.mxu0 0.0
        %1457 = vmatpush1.msra.mxu0 0.0
        %1458 = vmatprep.subr.mxu0 0.0
        %1459 = vmatpush1.msra.mxu0 0.0
        %1460 = vmatprep.subr.mxu0 0.0
        %1461 = vmatpush1.msra.mxu0 0.0
        %1462 = vmatprep.subr.mxu0 0.0
        %1463 = vmatpush1.msra.mxu0 0.0
        %1464 = vmatprep.subr.mxu0 0.0
        %1465 = vmatpush1.msra.mxu0 0.0
        %1466 = vmatprep.subr.mxu0 0.0
        %1467 = vmatpush1.msra.mxu0 0.0
        %1468 = vmatprep.subr.mxu0 0.0
        %1469 = vmatpush1.msra.mxu0 0.0
        %1470 = vmatprep.subr.mxu0 0.0
        %1471 = vmatpush1.msra.mxu0 0.0
        %1472 = vmatprep.subr.mxu0 0.0
        %1473 = vmatpush1.msra.mxu0 0.0
        %1474 = vmatprep.subr.mxu0 0.0
        %1475 = vmatpush1.msra.mxu0 0.0
        %1476 = vmatprep.subr.mxu0 0.0
        %1477 = vmatpush1.msra.mxu0 0.0
        %1478 = vmatprep.subr.mxu0 0.0
        %1479 = vmatpush1.msra.mxu0 0.0
        %1480 = vmatprep.subr.mxu0 0.0
        %1481 = vmatpush1.msra.mxu0 0.0
        %1482 = vmatprep.subr.mxu0 0.0
        %1483 = vmatpush1.msra.mxu0 0.0
        %1484 = vmatprep.subr.mxu0 0.0
        %1485 = vmatpush1.msra.mxu0 0.0
        %1486 = vmatprep.subr.mxu0 0.0
        %1487 = vmatpush1.msra.mxu0 0.0
        %1488 = vmatprep.subr.mxu0 0.0
        %1489 = vmatpush1.msra.mxu0 0.0
        %1490 = vmatprep.subr.mxu0 0.0
        %1491 = vmatpush1.msra.mxu0 0.0
        %1492 = vmatprep.subr.mxu0 0.0
        %1493 = vmatpush1.msra.mxu0 0.0
        %1494 = vmatprep.subr.mxu0 0.0
        %1495 = vmatpush1.msra.mxu0 0.0
        %1496 = vmatprep.subr.mxu0 0.0
        %1497 = vmatpush1.msra.mxu0 0.0
        %1498 = vmatprep.mubr.f32.mxu0 0.0
        %1499 = vmatmul.mubr.f32.gmra.mrb[0].mxu0 %v1429
        %v1500 = vpop.f32.mrb[0].mxu0
        %v1501 = vadd.f32 0.0, %v1500
        %v1502 = vpop.f32.mrb[0].mxu0
        %1503 = vmatprep.mubr.f32.mxu0 0.0
        %1504 = vmatmul.mubr.f32.gmra.mrb[0].mxu0 %v1432
        %v1505 = vpop.f32.mrb[0].mxu0
        %v1506 = vadd.f32 0.0, %v1505
        %v1507 = vpop.f32.mrb[0].mxu0
        %1508 = vdwg.mxu0
        %v1510 = vsel %vm1027, %v1426, 0
        %v1513 = vsel %vm1027, %v1427, 0
        %1515 = vmatprep.subr.mxu0 0.0
        %1516 = vmatpush1.msra.mxu0 %v861
        %1517 = vmatprep.subr.mxu0 0.0
        %1518 = vmatpush1.msra.mxu0 %v867
        %1519 = vmatprep.subr.mxu0 0.0
        %1520 = vmatpush1.msra.mxu0 0.0
        %1521 = vmatprep.subr.mxu0 0.0
        %1522 = vmatpush1.msra.mxu0 0.0
        %1523 = vmatprep.subr.mxu0 0.0
        %1524 = vmatpush1.msra.mxu0 0.0
        %1525 = vmatprep.subr.mxu0 0.0
        %1526 = vmatpush1.msra.mxu0 0.0
        %1527 = vmatprep.subr.mxu0 0.0
        %1528 = vmatpush1.msra.mxu0 0.0
        %1529 = vmatprep.subr.mxu0 0.0
        %1530 = vmatpush1.msra.mxu0 0.0
        %1531 = vmatprep.subr.mxu0 0.0
        %1532 = vmatpush1.msra.mxu0 0.0
        %1533 = vmatprep.subr.mxu0 0.0
        %1534 = vmatpush1.msra.mxu0 0.0
        %1535 = vmatprep.subr.mxu0 0.0
        %1536 = vmatpush1.msra.mxu0 0.0
        %1537 = vmatprep.subr.mxu0 0.0
        %1538 = vmatpush1.msra.mxu0 0.0
        %1539 = vmatprep.subr.mxu0 0.0
        %1540 = vmatpush1.msra.mxu0 0.0
        %1541 = vmatprep.subr.mxu0 0.0
        %1542 = vmatpush1.msra.mxu0 0.0
        %1543 = vmatprep.subr.mxu0 0.0
        %1544 = vmatpush1.msra.mxu0 0.0
        %1545 = vmatprep.subr.mxu0 0.0
        %1546 = vmatpush1.msra.mxu0 0.0
        %1547 = vmatprep.subr.mxu0 0.0
        %1548 = vmatpush1.msra.mxu0 0.0
        %1549 = vmatprep.subr.mxu0 0.0
        %1550 = vmatpush1.msra.mxu0 0.0
        %1551 = vmatprep.subr.mxu0 0.0
        %1552 = vmatpush1.msra.mxu0 0.0
        %1553 = vmatprep.subr.mxu0 0.0
        %1554 = vmatpush1.msra.mxu0 0.0
        %1555 = vmatprep.subr.mxu0 0.0
        %1556 = vmatpush1.msra.mxu0 0.0
        %1557 = vmatprep.subr.mxu0 0.0
        %1558 = vmatpush1.msra.mxu0 0.0
        %1559 = vmatprep.subr.mxu0 0.0
        %1560 = vmatpush1.msra.mxu0 0.0
        %1561 = vmatprep.subr.mxu0 0.0
        %1562 = vmatpush1.msra.mxu0 0.0
        %1563 = vmatprep.subr.mxu0 0.0
        %1564 = vmatpush1.msra.mxu0 0.0
        %1565 = vmatprep.subr.mxu0 0.0
        %1566 = vmatpush1.msra.mxu0 0.0
        %1567 = vmatprep.subr.mxu0 0.0
        %1568 = vmatpush1.msra.mxu0 0.0
        %1569 = vmatprep.subr.mxu0 0.0
        %1570 = vmatpush1.msra.mxu0 0.0
        %1571 = vmatprep.subr.mxu0 0.0
        %1572 = vmatpush1.msra.mxu0 0.0
        %1573 = vmatprep.subr.mxu0 0.0
        %1574 = vmatpush1.msra.mxu0 0.0
        %1575 = vmatprep.subr.mxu0 0.0
        %1576 = vmatpush1.msra.mxu0 0.0
        %1577 = vmatprep.subr.mxu0 0.0
        %1578 = vmatpush1.msra.mxu0 0.0
        %1579 = vmatprep.mubr.f32.mxu0 0.0
        %1580 = vmatmul.mubr.f32.gmra.mrb[0].mxu0 %v1510
        %v1581 = vpop.f32.mrb[0].mxu0
        %v1582 = vadd.f32 0.0, %v1581
        %v1583 = vpop.f32.mrb[0].mxu0
        %1584 = vmatprep.mubr.f32.mxu0 0.0
        %1585 = vmatmul.mubr.f32.gmra.mrb[0].mxu0 %v1513
        %v1586 = vpop.f32.mrb[0].mxu0
        %v1587 = vadd.f32 0.0, %v1586
        %v1588 = vpop.f32.mrb[0].mxu0
        %1589 = vdwg.mxu0
        %v1590 = vld [vmem:[#allocation7] sm:$0xff]
        %v1591 = vld [vmem:[#allocation7 + $0x8] sm:$0xff]
        %v1592 = vld [vmem:[#allocation7 + $0x10] sm:$0xff]
        %v1593 = vld [vmem:[#allocation7 + $0x18] sm:$0xff]
        %v1594 = vld [vmem:[#allocation7 + $0x20] sm:$0xff]
        %v1595 = vld [vmem:[#allocation7 + $0x28] sm:$0xff]
        %v1596 = vld [vmem:[#allocation7 + $0x30] sm:$0xff]
        %v1597 = vld [vmem:[#allocation7 + $0x38] sm:$0xff]
        %v1598 = vld [vmem:[#allocation7 + $0x40] sm:$0xff]
        %v1599 = vld [vmem:[#allocation7 + $0x48] sm:$0xff]
        %v1600 = vld [vmem:[#allocation7 + $0x50] sm:$0xff]
        %v1601 = vld [vmem:[#allocation7 + $0x58] sm:$0xff]
        %v1602 = vld [vmem:[#allocation7 + $0x60] sm:$0xff]
        %v1603 = vld [vmem:[#allocation7 + $0x68] sm:$0xff]
        %v1604 = vld [vmem:[#allocation7 + $0x70] sm:$0xff]
        %v1605 = vld [vmem:[#allocation7 + $0x78] sm:$0xff]
        %v1606 = vld [vmem:[#allocation7 + $0x80] sm:$0xff]
        %v1607 = vld [vmem:[#allocation7 + $0x88] sm:$0xff]
        %v1608 = vld [vmem:[#allocation7 + $0x90] sm:$0xff]
        %v1609 = vld [vmem:[#allocation7 + $0x98] sm:$0xff]
        %v1610 = vld [vmem:[#allocation7 + $0xa0] sm:$0xff]
        %v1611 = vld [vmem:[#allocation7 + $0xa8] sm:$0xff]
        %v1612 = vld [vmem:[#allocation7 + $0xb0] sm:$0xff]
        %v1613 = vld [vmem:[#allocation7 + $0xb8] sm:$0xff]
        %v1614 = vld [vmem:[#allocation7 + $0xc0] sm:$0xff]
        %v1615 = vld [vmem:[#allocation7 + $0xc8] sm:$0xff]
        %v1616 = vld [vmem:[#allocation7 + $0xd0] sm:$0xff]
        %v1617 = vld [vmem:[#allocation7 + $0xd8] sm:$0xff]
        %v1618 = vld [vmem:[#allocation7 + $0xe0] sm:$0xff]
        %v1619 = vld [vmem:[#allocation7 + $0xe8] sm:$0xff]
        %v1620 = vld [vmem:[#allocation7 + $0xf0] sm:$0xff]
        %v1621 = vld [vmem:[#allocation7 + $0xf8] sm:$0xff]
        %v1622 = vld [vmem:[#allocation8] sm:$0x1]
        %v1624 = vlaneseq
        %v1625 = vshrl.u32 %v1624, 7
        %v1626 = vsub.s32 0, %v1625
        %v1627 = vrot.slane %v1622, %v1626
        %1629 = vmatprep.subr.mxu0 0.0
        %1630 = vmatpush1.msra.mxu0 %v1590
        %1631 = vmatprep.subr.mxu0 0.0
        %1632 = vmatpush1.msra.mxu0 %v1591
        %1633 = vmatprep.subr.mxu0 0.0
        %1634 = vmatpush1.msra.mxu0 %v1592
        %1635 = vmatprep.subr.mxu0 0.0
        %1636 = vmatpush1.msra.mxu0 %v1593
        %1637 = vmatprep.subr.mxu0 0.0
        %1638 = vmatpush1.msra.mxu0 %v1594
        %1639 = vmatprep.subr.mxu0 0.0
        %1640 = vmatpush1.msra.mxu0 %v1595
        %1641 = vmatprep.subr.mxu0 0.0
        %1642 = vmatpush1.msra.mxu0 %v1596
        %1643 = vmatprep.subr.mxu0 0.0
        %1644 = vmatpush1.msra.mxu0 %v1597
        %1645 = vmatprep.subr.mxu0 0.0
        %1646 = vmatpush1.msra.mxu0 %v1598
        %1647 = vmatprep.subr.mxu0 0.0
        %1648 = vmatpush1.msra.mxu0 %v1599
        %1649 = vmatprep.subr.mxu0 0.0
        %1650 = vmatpush1.msra.mxu0 %v1600
        %1651 = vmatprep.subr.mxu0 0.0
        %1652 = vmatpush1.msra.mxu0 %v1601
        %1653 = vmatprep.subr.mxu0 0.0
        %1654 = vmatpush1.msra.mxu0 %v1602
        %1655 = vmatprep.subr.mxu0 0.0
        %1656 = vmatpush1.msra.mxu0 %v1603
        %1657 = vmatprep.subr.mxu0 0.0
        %1658 = vmatpush1.msra.mxu0 %v1604
        %1659 = vmatprep.subr.mxu0 0.0
        %1660 = vmatpush1.msra.mxu0 %v1605
        %1661 = vmatprep.subr.mxu0 0.0
        %1662 = vmatpush1.msra.mxu0 %v1606
        %1663 = vmatprep.subr.mxu0 0.0
        %1664 = vmatpush1.msra.mxu0 %v1607
        %1665 = vmatprep.subr.mxu0 0.0
        %1666 = vmatpush1.msra.mxu0 %v1608
        %1667 = vmatprep.subr.mxu0 0.0
        %1668 = vmatpush1.msra.mxu0 %v1609
        %1669 = vmatprep.subr.mxu0 0.0
        %1670 = vmatpush1.msra.mxu0 %v1610
        %1671 = vmatprep.subr.mxu0 0.0
        %1672 = vmatpush1.msra.mxu0 %v1611
        %1673 = vmatprep.subr.mxu0 0.0
        %1674 = vmatpush1.msra.mxu0 %v1612
        %1675 = vmatprep.subr.mxu0 0.0
        %1676 = vmatpush1.msra.mxu0 %v1613
        %1677 = vmatprep.subr.mxu0 0.0
        %1678 = vmatpush1.msra.mxu0 %v1614
        %1679 = vmatprep.subr.mxu0 0.0
        %1680 = vmatpush1.msra.mxu0 %v1615
        %1681 = vmatprep.subr.mxu0 0.0
        %1682 = vmatpush1.msra.mxu0 %v1616
        %1683 = vmatprep.subr.mxu0 0.0
        %1684 = vmatpush1.msra.mxu0 %v1617
        %1685 = vmatprep.subr.mxu0 0.0
        %1686 = vmatpush1.msra.mxu0 %v1618
        %1687 = vmatprep.subr.mxu0 0.0
        %1688 = vmatpush1.msra.mxu0 %v1619
        %1689 = vmatprep.subr.mxu0 0.0
        %1690 = vmatpush1.msra.mxu0 %v1620
        %1691 = vmatprep.subr.mxu0 0.0
        %1692 = vmatpush1.msra.mxu0 %v1621
        %1693 = vmatprep.mubr.f32.mxu0 %v1501
        %1694 = vmatmul.mubr.f32.gmra.mrb[0].mxu0 %v1145
        %v1695 = vpop.f32.mrb[0].mxu0
        %v1696 = vadd.f32 %v1627, %v1695
        %v1697 = vpop.f32.mrb[0].mxu0
        %1698 = vmatprep.mubr.f32.mxu0 %v1506
        %1699 = vmatmul.mubr.f32.gmra.mrb[0].mxu0 %v1150
        %v1700 = vpop.f32.mrb[0].mxu0
        %v1701 = vadd.f32 %v1627, %v1700
        %v1702 = vpop.f32.mrb[0].mxu0
        %1703 = vmatprep.mubr.f32.mxu0 %v1582
        %1704 = vmatmul.mubr.f32.gmra.mrb[0].mxu0 %v1226
        %v1705 = vpop.f32.mrb[0].mxu0
        %v1706 = vadd.f32 %v1627, %v1705
        %v1707 = vpop.f32.mrb[0].mxu0
        %1708 = vmatprep.mubr.f32.mxu0 %v1587
        %1709 = vmatmul.mubr.f32.gmra.mrb[0].mxu0 %v1231
        %v1710 = vpop.f32.mrb[0].mxu0
        %v1711 = vadd.f32 %v1627, %v1710
        %v1712 = vpop.f32.mrb[0].mxu0
        %1713 = vdwg.mxu0
        %v1714 = vld [vmem:[#allocation16] sm:$0x1]
        %v1715 = vld [vmem:[#allocation17] sm:$0x1]
        %v1716 = vadd.f32 %v502, %v1696
        %v1717 = vadd.f32 %v503, %v1701
        %v1718 = vadd.f32 %v504, %v1706
        %v1719 = vadd.f32 %v505, %v1711
        %1720 = vadd.xlane.f32.xlu0 %v1716
        %v1721 = vpop.xlane.xlu0 %1720
        %1722 = vadd.xlane.f32.xlu0 %v1717
        %v1723 = vpop.xlane.xlu0 %1722
        %1724 = vadd.xlane.f32.xlu0 %v1718
        %v1725 = vpop.xlane.xlu0 %1724
        %1726 = vadd.xlane.f32.xlu0 %v1719
        %v1727 = vpop.xlane.xlu0 %1726
        %v1728 = vrcp.pop 128.0
        %v1729 = vmul.f32 %v1721, %v1728
        %v1730 = vmul.f32 %v1723, %v1728
        %v1731 = vmul.f32 %v1725, %v1728
        %v1732 = vmul.f32 %v1727, %v1728
        %v1733 = vsub.f32 %v1716, %v1729
        %v1734 = vsub.f32 %v1717, %v1730
        %v1735 = vsub.f32 %v1718, %v1731
        %v1736 = vsub.f32 %v1719, %v1732
        %v1737 = vmul.f32 %v1733, %v1733
        %v1738 = vmul.f32 %v1734, %v1734
        %v1739 = vmul.f32 %v1735, %v1735
        %v1740 = vmul.f32 %v1736, %v1736
        %1741 = vadd.xlane.f32.xlu0 %v1737
        %v1742 = vpop.xlane.xlu0 %1741
        %1743 = vadd.xlane.f32.xlu0 %v1738
        %v1744 = vpop.xlane.xlu0 %1743
        %1745 = vadd.xlane.f32.xlu0 %v1739
        %v1746 = vpop.xlane.xlu0 %1745
        %1747 = vadd.xlane.f32.xlu0 %v1740
        %v1748 = vpop.xlane.xlu0 %1747
        %v1749 = vmul.f32 %v1742, %v1728
        %v1750 = vmul.f32 %v1744, %v1728
        %v1751 = vmul.f32 %v1746, %v1728
        %v1752 = vmul.f32 %v1748, %v1728
        %v1753 = vadd.f32 %v1749, 1e-05
        %v1754 = vadd.f32 %v1750, 1e-05
        %v1755 = vadd.f32 %v1751, 1e-05
        %v1756 = vadd.f32 %v1752, 1e-05
        %v1757 = vrsqrt.pop %v1753
        %v1758 = vrsqrt.pop %v1754
        %v1759 = vrsqrt.pop %v1755
        %v1760 = vrsqrt.pop %v1756
        %v1761 = vmul.f32 %v1733, %v1757
        %v1762 = vmul.f32 %v1734, %v1758
        %v1763 = vmul.f32 %v1735, %v1759
        %v1764 = vmul.f32 %v1736, %v1760
        %v1766 = vlaneseq
        %v1767 = vshrl.u32 %v1766, 7
        %v1768 = vsub.s32 0, %v1767
        %v1769 = vrot.slane %v1714, %v1768
        %v1771 = vmul.f32 %v1761, %v1769
        %v1772 = vmul.f32 %v1762, %v1769
        %v1773 = vmul.f32 %v1763, %v1769
        %v1774 = vmul.f32 %v1764, %v1769
        %v1776 = vlaneseq
        %v1777 = vshrl.u32 %v1776, 7
        %v1778 = vsub.s32 0, %v1777
        %v1779 = vrot.slane %v1715, %v1778
        %v1781 = vadd.f32 %v1771, %v1779
        %v1782 = vadd.f32 %v1772, %v1779
        %v1783 = vadd.f32 %v1773, %v1779
        %v1784 = vadd.f32 %v1774, %v1779
        %v1785 = vld [vmem:[#allocation10] sm:$0xff]
        %v1786 = vld [vmem:[#allocation10 + $0x8] sm:$0xff]
        %v1787 = vld [vmem:[#allocation10 + $0x10] sm:$0xff]
        %v1788 = vld [vmem:[#allocation10 + $0x18] sm:$0xff]
        %v1789 = vld [vmem:[#allocation10 + $0x20] sm:$0xff]
        %v1790 = vld [vmem:[#allocation10 + $0x28] sm:$0xff]
        %v1791 = vld [vmem:[#allocation10 + $0x30] sm:$0xff]
        %v1792 = vld [vmem:[#allocation10 + $0x38] sm:$0xff]
        %v1793 = vld [vmem:[#allocation10 + $0x40] sm:$0xff]
        %v1794 = vld [vmem:[#allocation10 + $0x48] sm:$0xff]
        %v1795 = vld [vmem:[#allocation10 + $0x50] sm:$0xff]
        %v1796 = vld [vmem:[#allocation10 + $0x58] sm:$0xff]
        %v1797 = vld [vmem:[#allocation10 + $0x60] sm:$0xff]
        %v1798 = vld [vmem:[#allocation10 + $0x68] sm:$0xff]
        %v1799 = vld [vmem:[#allocation10 + $0x70] sm:$0xff]
        %v1800 = vld [vmem:[#allocation10 + $0x78] sm:$0xff]
        %v1801 = vld [vmem:[#allocation11] sm:$0x1]
        %v1803 = vlaneseq
        %v1804 = vshrl.u32 %v1803, 7
        %v1805 = vsub.s32 0, %v1804
        %v1806 = vrot.slane %v1801, %v1805
        %1808 = vmatprep.subr.mxu0 0.0
        %1809 = vmatpush1.msra.mxu0 %v1785
        %1810 = vmatprep.subr.mxu0 0.0
        %1811 = vmatpush1.msra.mxu0 %v1786
        %1812 = vmatprep.subr.mxu0 0.0
        %1813 = vmatpush1.msra.mxu0 %v1787
        %1814 = vmatprep.subr.mxu0 0.0
        %1815 = vmatpush1.msra.mxu0 %v1788
        %1816 = vmatprep.subr.mxu0 0.0
        %1817 = vmatpush1.msra.mxu0 %v1789
        %1818 = vmatprep.subr.mxu0 0.0
        %1819 = vmatpush1.msra.mxu0 %v1790
        %1820 = vmatprep.subr.mxu0 0.0
        %1821 = vmatpush1.msra.mxu0 %v1791
        %1822 = vmatprep.subr.mxu0 0.0
        %1823 = vmatpush1.msra.mxu0 %v1792
        %1824 = vmatprep.subr.mxu0 0.0
        %1825 = vmatpush1.msra.mxu0 %v1793
        %1826 = vmatprep.subr.mxu0 0.0
        %1827 = vmatpush1.msra.mxu0 %v1794
        %1828 = vmatprep.subr.mxu0 0.0
        %1829 = vmatpush1.msra.mxu0 %v1795
        %1830 = vmatprep.subr.mxu0 0.0
        %1831 = vmatpush1.msra.mxu0 %v1796
        %1832 = vmatprep.subr.mxu0 0.0
        %1833 = vmatpush1.msra.mxu0 %v1797
        %1834 = vmatprep.subr.mxu0 0.0
        %1835 = vmatpush1.msra.mxu0 %v1798
        %1836 = vmatprep.subr.mxu0 0.0
        %1837 = vmatpush1.msra.mxu0 %v1799
        %1838 = vmatprep.subr.mxu0 0.0
        %1839 = vmatpush1.msra.mxu0 %v1800
        %1840 = vmatprep.subr.mxu0 0.0
        %1841 = vmatpush1.msra.mxu0 0.0
        %1842 = vmatprep.subr.mxu0 0.0
        %1843 = vmatpush1.msra.mxu0 0.0
        %1844 = vmatprep.subr.mxu0 0.0
        %1845 = vmatpush1.msra.mxu0 0.0
        %1846 = vmatprep.subr.mxu0 0.0
        %1847 = vmatpush1.msra.mxu0 0.0
        %1848 = vmatprep.subr.mxu0 0.0
        %1849 = vmatpush1.msra.mxu0 0.0
        %1850 = vmatprep.subr.mxu0 0.0
        %1851 = vmatpush1.msra.mxu0 0.0
        %1852 = vmatprep.subr.mxu0 0.0
        %1853 = vmatpush1.msra.mxu0 0.0
        %1854 = vmatprep.subr.mxu0 0.0
        %1855 = vmatpush1.msra.mxu0 0.0
        %1856 = vmatprep.subr.mxu0 0.0
        %1857 = vmatpush1.msra.mxu0 0.0
        %1858 = vmatprep.subr.mxu0 0.0
        %1859 = vmatpush1.msra.mxu0 0.0
        %1860 = vmatprep.subr.mxu0 0.0
        %1861 = vmatpush1.msra.mxu0 0.0
        %1862 = vmatprep.subr.mxu0 0.0
        %1863 = vmatpush1.msra.mxu0 0.0
        %1864 = vmatprep.subr.mxu0 0.0
        %1865 = vmatpush1.msra.mxu0 0.0
        %1866 = vmatprep.subr.mxu0 0.0
        %1867 = vmatpush1.msra.mxu0 0.0
        %1868 = vmatprep.subr.mxu0 0.0
        %1869 = vmatpush1.msra.mxu0 0.0
        %1870 = vmatprep.subr.mxu0 0.0
        %1871 = vmatpush1.msra.mxu0 0.0
        %1872 = vmatprep.mubr.f32.mxu0 0.0
        %1873 = vmatmul.mubr.f32.gmra.mrb[0].mxu0 %v1781
        %v1874 = vpop.f32.mrb[0].mxu0
        %v1875 = vadd.f32 %v1806, %v1874
        %v1876 = vpop.f32.mrb[0].mxu0
        %1877 = vmatprep.mubr.f32.mxu0 0.0
        %1878 = vmatmul.mubr.f32.gmra.mrb[0].mxu0 %v1782
        %v1879 = vpop.f32.mrb[0].mxu0
        %v1880 = vadd.f32 %v1806, %v1879
        %v1881 = vpop.f32.mrb[0].mxu0
        %1882 = vmatprep.mubr.f32.mxu0 0.0
        %1883 = vmatmul.mubr.f32.gmra.mrb[0].mxu0 %v1783
        %v1884 = vpop.f32.mrb[0].mxu0
        %v1885 = vadd.f32 %v1806, %v1884
        %v1886 = vpop.f32.mrb[0].mxu0
        %1887 = vmatprep.mubr.f32.mxu0 0.0
        %1888 = vmatmul.mubr.f32.gmra.mrb[0].mxu0 %v1784
        %v1889 = vpop.f32.mrb[0].mxu0
        %v1890 = vadd.f32 %v1806, %v1889
        %v1891 = vpop.f32.mrb[0].mxu0
        %1892 = vdwg.mxu0
        %v1893 = vmax.f32 %v1875, 0.0
        %v1894 = vmax.f32 %v1880, 0.0
        %v1895 = vmax.f32 %v1885, 0.0
        %v1896 = vmax.f32 %v1890, 0.0
        %v1897 = vld [vmem:[#allocation13] sm:$0xff]
        %v1898 = vld [vmem:[#allocation13 + $0x8] sm:$0xff]
        %v1899 = vld [vmem:[#allocation13 + $0x10] sm:$0xff]
        %v1900 = vld [vmem:[#allocation13 + $0x18] sm:$0xff]
        %v1901 = vld [vmem:[#allocation13 + $0x20] sm:$0xff]
        %v1902 = vld [vmem:[#allocation13 + $0x28] sm:$0xff]
        %v1903 = vld [vmem:[#allocation13 + $0x30] sm:$0xff]
        %v1904 = vld [vmem:[#allocation13 + $0x38] sm:$0xff]
        %v1905 = vld [vmem:[#allocation13 + $0x40] sm:$0xff]
        %v1906 = vld [vmem:[#allocation13 + $0x48] sm:$0xff]
        %v1907 = vld [vmem:[#allocation13 + $0x50] sm:$0xff]
        %v1908 = vld [vmem:[#allocation13 + $0x58] sm:$0xff]
        %v1909 = vld [vmem:[#allocation13 + $0x60] sm:$0xff]
        %v1910 = vld [vmem:[#allocation13 + $0x68] sm:$0xff]
        %v1911 = vld [vmem:[#allocation13 + $0x70] sm:$0xff]
        %v1912 = vld [vmem:[#allocation13 + $0x78] sm:$0xff]
        %v1913 = vld [vmem:[#allocation14] sm:$0x1]
        %v1915 = vlaneseq
        %v1916 = vshrl.u32 %v1915, 7
        %v1917 = vsub.s32 0, %v1916
        %v1918 = vrot.slane %v1913, %v1917
        %1920 = vmatprep.subr.mxu0 0.0
        %1921 = vmatpush1.msra.mxu0 %v1897
        %1922 = vmatprep.subr.mxu0 0.0
        %1923 = vmatpush1.msra.mxu0 %v1898
        %1924 = vmatprep.subr.mxu0 0.0
        %1925 = vmatpush1.msra.mxu0 %v1899
        %1926 = vmatprep.subr.mxu0 0.0
        %1927 = vmatpush1.msra.mxu0 %v1900
        %1928 = vmatprep.subr.mxu0 0.0
        %1929 = vmatpush1.msra.mxu0 %v1901
        %1930 = vmatprep.subr.mxu0 0.0
        %1931 = vmatpush1.msra.mxu0 %v1902
        %1932 = vmatprep.subr.mxu0 0.0
        %1933 = vmatpush1.msra.mxu0 %v1903
        %1934 = vmatprep.subr.mxu0 0.0
        %1935 = vmatpush1.msra.mxu0 %v1904
        %1936 = vmatprep.subr.mxu0 0.0
        %1937 = vmatpush1.msra.mxu0 %v1905
        %1938 = vmatprep.subr.mxu0 0.0
        %1939 = vmatpush1.msra.mxu0 %v1906
        %1940 = vmatprep.subr.mxu0 0.0
        %1941 = vmatpush1.msra.mxu0 %v1907
        %1942 = vmatprep.subr.mxu0 0.0
        %1943 = vmatpush1.msra.mxu0 %v1908
        %1944 = vmatprep.subr.mxu0 0.0
        %1945 = vmatpush1.msra.mxu0 %v1909
        %1946 = vmatprep.subr.mxu0 0.0
        %1947 = vmatpush1.msra.mxu0 %v1910
        %1948 = vmatprep.subr.mxu0 0.0
        %1949 = vmatpush1.msra.mxu0 %v1911
        %1950 = vmatprep.subr.mxu0 0.0
        %1951 = vmatpush1.msra.mxu0 %v1912
        %1952 = vmatprep.subr.mxu0 0.0
        %1953 = vmatpush1.msra.mxu0 0.0
        %1954 = vmatprep.subr.mxu0 0.0
        %1955 = vmatpush1.msra.mxu0 0.0
        %1956 = vmatprep.subr.mxu0 0.0
        %1957 = vmatpush1.msra.mxu0 0.0
        %1958 = vmatprep.subr.mxu0 0.0
        %1959 = vmatpush1.msra.mxu0 0.0
        %1960 = vmatprep.subr.mxu0 0.0
        %1961 = vmatpush1.msra.mxu0 0.0
        %1962 = vmatprep.subr.mxu0 0.0
        %1963 = vmatpush1.msra.mxu0 0.0
        %1964 = vmatprep.subr.mxu0 0.0
        %1965 = vmatpush1.msra.mxu0 0.0
        %1966 = vmatprep.subr.mxu0 0.0
        %1967 = vmatpush1.msra.mxu0 0.0
        %1968 = vmatprep.subr.mxu0 0.0
        %1969 = vmatpush1.msra.mxu0 0.0
        %1970 = vmatprep.subr.mxu0 0.0
        %1971 = vmatpush1.msra.mxu0 0.0
        %1972 = vmatprep.subr.mxu0 0.0
        %1973 = vmatpush1.msra.mxu0 0.0
        %1974 = vmatprep.subr.mxu0 0.0
        %1975 = vmatpush1.msra.mxu0 0.0
        %1976 = vmatprep.subr.mxu0 0.0
        %1977 = vmatpush1.msra.mxu0 0.0
        %1978 = vmatprep.subr.mxu0 0.0
        %1979 = vmatpush1.msra.mxu0 0.0
        %1980 = vmatprep.subr.mxu0 0.0
        %1981 = vmatpush1.msra.mxu0 0.0
        %1982 = vmatprep.subr.mxu0 0.0
        %1983 = vmatpush1.msra.mxu0 0.0
        %1984 = vmatprep.mubr.f32.mxu0 0.0
        %1985 = vmatmul.mubr.f32.gmra.mrb[0].mxu0 %v1893
        %v1986 = vpop.f32.mrb[0].mxu0
        %v1987 = vadd.f32 %v1918, %v1986
        %v1988 = vpop.f32.mrb[0].mxu0
        %1989 = vmatprep.mubr.f32.mxu0 0.0
        %1990 = vmatmul.mubr.f32.gmra.mrb[0].mxu0 %v1894
        %v1991 = vpop.f32.mrb[0].mxu0
        %v1992 = vadd.f32 %v1918, %v1991
        %v1993 = vpop.f32.mrb[0].mxu0
        %1994 = vmatprep.mubr.f32.mxu0 0.0
        %1995 = vmatmul.mubr.f32.gmra.mrb[0].mxu0 %v1895
        %v1996 = vpop.f32.mrb[0].mxu0
        %v1997 = vadd.f32 %v1918, %v1996
        %v1998 = vpop.f32.mrb[0].mxu0
        %1999 = vmatprep.mubr.f32.mxu0 0.0
        %2000 = vmatmul.mubr.f32.gmra.mrb[0].mxu0 %v1896
        %v2001 = vpop.f32.mrb[0].mxu0
        %v2002 = vadd.f32 %v1918, %v2001
        %v2003 = vpop.f32.mrb[0].mxu0
        %2004 = vdwg.mxu0
        %v2005 = vadd.f32 %v1781, %v1987
        %v2006 = vadd.f32 %v1782, %v1992
        %v2007 = vadd.f32 %v1783, %v1997
        %v2008 = vadd.f32 %v1784, %v2002
        %2009 = vadd.xlane.f32.xlu0 %v2005
        %v2010 = vpop.xlane.xlu0 %2009
        %2011 = vadd.xlane.f32.xlu0 %v2006
        %v2012 = vpop.xlane.xlu0 %2011
        %2013 = vadd.xlane.f32.xlu0 %v2007
        %v2014 = vpop.xlane.xlu0 %2013
        %2015 = vadd.xlane.f32.xlu0 %v2008
        %v2016 = vpop.xlane.xlu0 %2015
        %v2017 = vmul.f32 %v2010, %v1728
        %v2018 = vmul.f32 %v2012, %v1728
        %v2019 = vmul.f32 %v2014, %v1728
        %v2020 = vmul.f32 %v2016, %v1728
        %v2021 = vsub.f32 %v2005, %v2017
        %v2022 = vsub.f32 %v2006, %v2018
        %v2023 = vsub.f32 %v2007, %v2019
        %v2024 = vsub.f32 %v2008, %v2020
        %v2025 = vmul.f32 %v2021, %v2021
        %v2026 = vmul.f32 %v2022, %v2022
        %v2027 = vmul.f32 %v2023, %v2023
        %v2028 = vmul.f32 %v2024, %v2024
        %2029 = vadd.xlane.f32.xlu0 %v2025
        %v2030 = vpop.xlane.xlu0 %2029
        %2031 = vadd.xlane.f32.xlu0 %v2026
        %v2032 = vpop.xlane.xlu0 %2031
        %2033 = vadd.xlane.f32.xlu0 %v2027
        %v2034 = vpop.xlane.xlu0 %2033
        %2035 = vadd.xlane.f32.xlu0 %v2028
        %v2036 = vpop.xlane.xlu0 %2035
        %v2037 = vmul.f32 %v2030, %v1728
        %v2038 = vmul.f32 %v2032, %v1728
        %v2039 = vmul.f32 %v2034, %v1728
        %v2040 = vmul.f32 %v2036, %v1728
        %v2041 = vadd.f32 %v2037, 1e-05
        %v2042 = vadd.f32 %v2038, 1e-05
        %v2043 = vadd.f32 %v2039, 1e-05
        %v2044 = vadd.f32 %v2040, 1e-05
        %v2045 = vrsqrt.pop %v2041
        %v2046 = vrsqrt.pop %v2042
        %v2047 = vrsqrt.pop %v2043
        %v2048 = vrsqrt.pop %v2044
        %v2049 = vmul.f32 %v2021, %v2045
        %v2050 = vmul.f32 %v2022, %v2046
        %v2051 = vmul.f32 %v2023, %v2047
        %v2052 = vmul.f32 %v2024, %v2048
        %v2053 = vmul.f32 %v2049, %v1769
        %v2054 = vmul.f32 %v2050, %v1769
        %v2055 = vmul.f32 %v2051, %v1769
        %v2056 = vmul.f32 %v2052, %v1769
        %v2057 = vadd.f32 %v2053, %v1779
        %v2058 = vadd.f32 %v2054, %v1779
        %v2059 = vadd.f32 %v2055, %v1779
        %v2060 = vadd.f32 %v2056, %v1779
        %2061 = vst [vmem:[%s499] sm:$0xff] %v2057
        %2062 = vst [vmem:[%s499 + $0x8] sm:$0xff] %v2058
        %2063 = vst [vmem:[%s499 + $0x10] sm:$0xff] %v2059
        %2064 = vst [vmem:[%s499 + $0x18] sm:$0xff] %v2060
        %s2065 = sand.u32 %s255, 1
        %s2066 = scalar_lea.sflag [#allocation4], %s2065
        %s2067 = sand.u32 %s255, 1
        %s2068 = smul.addr %s2067, 32
        %s2069 = scalar_lea.vmem [#allocation19], %s2068
        // Predicated region
        $region101: #{tpu_custom_call.1} parent=59 // pred_check
          %p2070 = pneg %p265
        $region102: #{tpu_custom_call.1} parent=59 // pred_check_branch
          %2072 = sbr.rel (%p2070) target = $region104
        $region103: #{tpu_custom_call.1} parent=59 // pred_region
          %s2073 = smul.u32 2, %s32
          %s2075 = ssub.s32 512, 512
          %2076 = vsyncadd %s2066, %s2075
          %s2077 = smul.addr %s2073, 2
          %s2078 = smul.addr %s2077, 128
          %s2079 = scalar_lea.hbm %s10, %s2078
          %s2080 = sshll.u32 %s2069, 4
          %s2081 = int_to_ptr.vmem [resolvable:$true] %s2080
          %2086 = dma.vmem_to_hbm [thread:$0]  %s2081, 512, %s2079, %s2066, 128, 128, 8
        $region104: #{tpu_custom_call.1} parent=59 // pred_fallthru
          _
      $region60: #{tpu_custom_call.1} parent=5 // pred_fallthru
        _
      %p2087 = scmp.le.s32.totalorder 2, %s27
      // Predicated region
      $region105: #{tpu_custom_call.1} parent=5 // pred_check
        %p2088 = pneg %p2087
      $region106: #{tpu_custom_call.1} parent=5 // pred_check_branch
        %2090 = sbr.rel (%p2088) target = $region108
      $region107: #{tpu_custom_call.1} parent=5 // pred_region
        %s2091 = ssub.s32 %s27, 2
        // Predicated region
        $region109: #{tpu_custom_call.1} parent=107 // pred_check
          %p2092 = pneg %p271
        $region110: #{tpu_custom_call.1} parent=107 // pred_check_branch
          %2094 = sbr.rel (%p2092) target = $region112
        $region111: #{tpu_custom_call.1} parent=107 // pred_region
          %s2095 = sand.u32 %s256, 1
          %s2096 = scalar_lea.sflag [#allocation4], %s2095
          %s2097 = sand.u32 %s256, 1
          %s2098 = smul.addr %s2097, 32
          %s2099 = scalar_lea.vmem [#allocation19], %s2098
          %2100 = dma.done %s2096, 512
        $region112: #{tpu_custom_call.1} parent=107 // pred_fallthru
          _
      $region108: #{tpu_custom_call.1} parent=5 // pred_fallthru
        _
    $region6: #{tpu_custom_call.1} parent=1 // loop_footer
      %s31 = sadd.s32 1, %s27
    $region7: #{tpu_custom_call.1} parent=1 // loop_footer_branch
      %26 = sbr.rel target = $region3
    $region8: #{tpu_custom_call.1} parent=1 // loop_exit
      _
    %2101 = vsyncpa [#allocation3], 1
    %s2102 = scalar_lea.sflag [#allocation3], 1
    %2103 = vsyncpa %s2102, 1
    %2104 = vsyncpa [#allocation6], 1
    %2105 = vsyncpa [#allocation9], 1
    %2106 = vsyncpa [#allocation12], 1
    %2107 = vsyncpa [#allocation15], 1
    %2108 = vsyncpa [#allocation18], 1
    %2109 = vsyncpa [#allocation4], 1
    %s2110 = scalar_lea.sflag [#allocation4], 1
    %2111 = vsyncpa %s2110, 1

</llo_original>
